<compile_context>
chip_gen: v7x
topology: tpu7x:2x2x1
jax: 0.10.0
libtpu: 0.0.40
codegen_flags: <defaults>
</compile_context>

<pallas_src>
import math
import numpy as np

import jax
import jax.numpy as jnp
from jax.experimental import pallas as pl
from jax.experimental.pallas import tpu as pltpu

# ----------------------------------------------------------------------------
# Toy config (mirrors toy_model_with_kv_cache.get_model_config, scaled small).
# ----------------------------------------------------------------------------
VOCAB_SIZE    = 256
NUM_LAYERS    = 2
MAX_SEQ_LEN   = 32                    # == kv_cache_max
EMBED_DIM     = 128
NUM_HEADS     = 8
HEAD_DIM      = 16
NUM_KV_GROUPS = 4                     # GQA: 2 query heads per kv group
Q_PER_KV      = NUM_HEADS // NUM_KV_GROUPS
INTERMEDIATE  = 256
ROTARY_BASE   = 10000.0
RMS_EPS       = 1e-5

Q_WIDTH    = NUM_HEADS * HEAD_DIM                     # 128
K_WIDTH    = NUM_KV_GROUPS * HEAD_DIM                 # 64
V_WIDTH    = NUM_KV_GROUPS * HEAD_DIM                 # 64
QKV_DIM    = Q_WIDTH + K_WIDTH + V_WIDTH              # 256
PROJ_WIDTH = QKV_DIM + Q_WIDTH + K_WIDTH              # 448 (qkv + pre-rotated q,k)
KV_PACK    = K_WIDTH + V_WIDTH                        # 128-lane packed KV cache rows

BATCH   = 1
SEQ_LEN = 8

NEG_MASK = -1e9                       # large finite (avoids NaN on masked rows)


def _vmem():
    return pl.BlockSpec(memory_space=pltpu.MemorySpace.VMEM)


def _smem():
    return pl.BlockSpec(memory_space=pltpu.MemorySpace.SMEM)


# ----------------------------------------------------------------------------
# In-kernel helper
# ----------------------------------------------------------------------------
def _rms_norm(x, w):
    """x: (B,T,D) f32, w: (1,D) f32.  (x * rsqrt(mean(x^2)+eps)) * w."""
    var = jnp.mean(x * x, axis=-1, keepdims=True)
    return (x * jax.lax.rsqrt(var + RMS_EPS)) * w[None, :, :]


# ----------------------------------------------------------------------------
# Kernel 1: fused transformer layer
#   pre-norm -> fused QKV(+pre-rotated RoPE) projection -> RoPE (wide slabs)
#   -> in-place KV cache update -> GQA attention (per-group, both heads batched)
#   -> folded output projection -> residual -> post-norm -> gated SiLU FFN
#   -> residual
# ----------------------------------------------------------------------------
def layer_kernel(pos_ref, x_ref, kv_ref, cos_ref, sin_ref, mask_ref,
                 pre_w_ref, w_big_ref, wo_t_ref, post_w_ref, w13_t_ref,
                 w2_t_ref, x_out_ref, kv_out_ref):
    pos = pos_ref[0]                                   # start position (SMEM scalar)
    x = x_ref[...]                                     # (B, T, D) f32
    B, T, D = x.shape
    scale = 1.0 / math.sqrt(HEAD_DIM)

    # ---- pre-attention RMSNorm + fused QKV / rotate_half projection (bf16 MXU)
    xn2 = _rms_norm(x, pre_w_ref[...]).reshape(B * T, D)
    proj = jnp.dot(xn2.astype(jnp.bfloat16), w_big_ref[...],
                   preferred_element_type=jnp.float32).reshape(B, T, PROJ_WIDTH)

    q_lin = proj[..., :Q_WIDTH]                        # (B,T,128) natural head-major
    k_lin = proj[..., Q_WIDTH:Q_WIDTH + K_WIDTH]       # (B,T,64)  natural group-major
    v_new = proj[..., Q_WIDTH + K_WIDTH:QKV_DIM]       # (B,T,64)
    q_rot = proj[..., QKV_DIM:QKV_DIM + Q_WIDTH]       # rotate_half(q) via weights
    k_rot = proj[..., QKV_DIM + Q_WIDTH:]              # rotate_half(k) via weights

    # ---- RoPE as two wide slab multiply-adds (cos/sin tables pre-tiled per head)
    cs = cos_ref[pl.ds(pos, T), :][None, :, :]         # (1,T,128)
    sn = sin_ref[pl.ds(pos, T), :][None, :, :]
    q = q_lin * cs + q_rot * sn                        # (B,T,128) RoPE'd queries
    k = k_lin * cs[..., :K_WIDTH] + k_rot * sn[..., :K_WIDTH]   # (B,T,64)

    # ---- in-place KV-cache update (packed [K | V], 128-lane rows)
    kv_out_ref[...] = kv_ref[...]
    kv_out_ref[:, pl.ds(pos, T), :] = jnp.concatenate([k, v_new], axis=-1)
    kv = kv_out_ref[...]                               # (B, S, 128) updated cache

    # ---- GQA attention: one score matmul + one PV matmul per KV group,
    #      both query heads of the group stacked along the row axis.
    mask = mask_ref[pl.ds(pos, T), :]                  # (T, S) additive causal mask
    mask2 = jnp.concatenate([mask, mask], axis=0)[None, :, :]   # (1, 2T, S)

    y = jnp.zeros((B * T, D), jnp.float32)             # attention @ W_o accumulator
    for g in range(NUM_KV_GROUPS):                     # static loop, 4 groups
        k_g = kv[..., g * HEAD_DIM:(g + 1) * HEAD_DIM]                    # (B,S,hd)
        v_g = kv[..., K_WIDTH + g * HEAD_DIM:K_WIDTH + (g + 1) * HEAD_DIM]
        qa = q[..., (2 * g) * HEAD_DIM:(2 * g + 1) * HEAD_DIM]            # head 2g
        qb = q[..., (2 * g + 1) * HEAD_DIM:(2 * g + 2) * HEAD_DIM]        # head 2g+1
        q_pair = jnp.concatenate([qa, qb], axis=1)                        # (B,2T,hd)

        s = jnp.einsum('btd,bsd->bts', q_pair, k_g,
                       preferred_element_type=jnp.float32) * scale + mask2
        m = jnp.max(s, axis=-1, keepdims=True)
        e = jnp.exp(s - m)
        p = e * pl.reciprocal(jnp.sum(e, axis=-1, keepdims=True), approx=True)
        o = jnp.einsum('bts,bsd->btd', p, v_g,
                       preferred_element_type=jnp.float32)                # (B,2T,hd)

        attn_g = jnp.concatenate([o[:, :T, :], o[:, T:, :]], axis=-1)     # (B,T,2*hd)
        # fold output projection: lane-dense (BT,128) partial accumulation
        y = y + jnp.dot(attn_g.reshape(B * T, Q_PER_KV * HEAD_DIM).astype(jnp.bfloat16),
                        wo_t_ref[2 * g * HEAD_DIM:(2 * g + 2) * HEAD_DIM, :],
                        preferred_element_type=jnp.float32)

    x1 = x + y.reshape(B, T, D)                        # residual 1

    # ---- post-attn RMSNorm + gated SiLU FFN (w1/w3 fused into one weight) + residual 2
    xn2b = _rms_norm(x1, post_w_ref[...]).reshape(B * T, D)
    h13 = jnp.dot(xn2b.astype(jnp.bfloat16), w13_t_ref[...],
                  preferred_element_type=jnp.float32)                     # (BT, 2*I)
    h1 = h13[:, :INTERMEDIATE]
    h3 = h13[:, INTERMEDIATE:]
    gated = h1 * jax.nn.sigmoid(h1) * h3
    ff = jnp.dot(gated.astype(jnp.bfloat16), w2_t_ref[...],
                 preferred_element_type=jnp.float32).reshape(B, T, D)
    x_out_ref[...] = x1 + ff


def transformer_layer(x, kv_cache, pos, cos_tab, sin_tab, mask, blk):
    B, T, D = x.shape
    return pl.pallas_call(
        layer_kernel,
        out_shape=(
            jax.ShapeDtypeStruct((B, T, D), jnp.float32),
            jax.ShapeDtypeStruct(kv_cache.shape, kv_cache.dtype),
        ),
        in_specs=[_smem()] + [_vmem() for _ in range(11)],
        out_specs=(_vmem(), _vmem()),
        input_output_aliases={2: 1},                   # kv cache updated in place
    )(pos, x, kv_cache, cos_tab, sin_tab, mask,
      blk["pre_norm"], blk["w_big_t"], blk["wo_t"],
      blk["post_norm"], blk["w13_t"], blk["w2_t"])


# ----------------------------------------------------------------------------
# Kernel 2: final RMSNorm + lm_head, tiled over vocab (parallel axis -> v7x)
# ----------------------------------------------------------------------------
def lm_head_kernel(x_ref, fin_w_ref, lm_w_t_ref, out_ref):
    x = x_ref[...]                                     # (B, T, D)
    B, T, D = x.shape
    xn = _rms_norm(x, fin_w_ref[...]).reshape(B * T, D)
    logits = jnp.dot(xn.astype(jnp.bfloat16), lm_w_t_ref[...],
                     preferred_element_type=jnp.float32)
    out_ref[...] = logits.reshape(B, T, -1)


def final_norm_lm_head(x, fin_w, lm_w_t, vocab_tile=128):
    B, T, D = x.shape
    V = lm_w_t.shape[1]
    assert V % vocab_tile == 0
    return pl.pallas_call(
        lm_head_kernel,
        out_shape=jax.ShapeDtypeStruct((B, T, V), jnp.float32),
        grid=(V // vocab_tile,),
        in_specs=[
            pl.BlockSpec((B, T, D), lambda j: (0, 0, 0)),
            pl.BlockSpec((1, D), lambda j: (0, 0)),
            pl.BlockSpec((D, vocab_tile), lambda j: (0, j)),
        ],
        out_specs=pl.BlockSpec((B, T, vocab_tile), lambda j: (0, 0, j)),
        compiler_params=pltpu.CompilerParams(dimension_semantics=("parallel",)),
    )(x, fin_w, lm_w_t)


# ----------------------------------------------------------------------------
# Parameter / cache construction (deterministic, synthetic)
# ----------------------------------------------------------------------------
def _qkv_grouped_to_flat_perm():
    """Row permutation mapping torch's grouped fused-QKV layout
    [g0: q..q k v | g1: q..q k v | ...] to flat [q0..qH-1 | k0..kKV-1 | v0..vKV-1]."""
    rows = []
    for h in range(NUM_HEADS):
        g, s = divmod(h, Q_PER_KV)
        base = (g * (Q_PER_KV + 2) + s) * HEAD_DIM
        rows.append(np.arange(base, base + HEAD_DIM))
    for g in range(NUM_KV_GROUPS):
        base = (g * (Q_PER_KV + 2) + Q_PER_KV) * HEAD_DIM
        rows.append(np.arange(base, base + HEAD_DIM))
    for g in range(NUM_KV_GROUPS):
        base = (g * (Q_PER_KV + 2) + Q_PER_KV + 1) * HEAD_DIM
        rows.append(np.arange(base, base + HEAD_DIM))
    return np.concatenate(rows)


def _pre_rotate_rows(w):
    """Rows of the rotate_half projection.  w: (n*HEAD_DIM, D) with per-head row
    order [x1 (hd/2) | x2 (hd/2)].  Output rows per head: [-x2 | x1], so that
    roped = lin * cos_tiled + rotated * sin_tiled reproduces half-split RoPE."""
    n = w.shape[0] // HEAD_DIM
    w4 = w.reshape(n, 2, HEAD_DIM // 2, w.shape[1])
    return jnp.concatenate([-w4[:, 1], w4[:, 0]], axis=1).reshape(n * HEAD_DIM,
                                                                  w.shape[1])


def init_params(key):
    scale = 0.02
    keys = jax.random.split(key, 2 + NUM_LAYERS)
    perm = _qkv_grouped_to_flat_perm()

    cos, sin = build_rope_cache(MAX_SEQ_LEN, HEAD_DIM, ROTARY_BASE)   # (S, hd/2)
    params = {
        "tok_embedding": jax.random.normal(keys[0], (VOCAB_SIZE, EMBED_DIM),
                                           jnp.float32) * scale,
        # nn.Linear weight is (out, in); kernels consume the bf16 transpose.
        "lm_head_t": (jax.random.normal(keys[1], (VOCAB_SIZE, EMBED_DIM),
                                        jnp.float32) * scale).T.astype(jnp.bfloat16),
        "final_norm": jnp.ones((1, EMBED_DIM), jnp.float32),
        # cos/sin tiled per head half ([cos|cos] per 16-wide head block).
        "cos_tab": jnp.tile(cos, (1, 2 * NUM_HEADS)),                 # (S, 128)
        "sin_tab": jnp.tile(sin, (1, 2 * NUM_HEADS)),                 # (S, 128)
        "mask": build_causal_mask_cache(MAX_SEQ_LEN),                 # (S, S)
        "blocks": [],
    }
    for i in range(NUM_LAYERS):
        k0, k1, k2, k3, k4 = jax.random.split(keys[2 + i], 5)
        w_qkv_grouped = jax.random.normal(k0, (QKV_DIM, EMBED_DIM),
                                          jnp.float32) * scale
        w_qkv_flat = w_qkv_grouped[perm]          # rows: [q flat | k flat | v flat]
        wq = w_qkv_flat[:Q_WIDTH]
        wk = w_qkv_flat[Q_WIDTH:Q_WIDTH + K_WIDTH]
        # fused projection: qkv + pre-rotated q + pre-rotated k  -> (448, D)
        w_big = jnp.concatenate(
            [w_qkv_flat, _pre_rotate_rows(wq), _pre_rotate_rows(wk)], axis=0)

        w1 = jax.random.normal(k2, (INTERMEDIATE, EMBED_DIM), jnp.float32) * scale
        w3 = jax.random.normal(k4, (INTERMEDIATE, EMBED_DIM), jnp.float32) * scale
        w2 = jax.random.normal(k3, (EMBED_DIM, INTERMEDIATE), jnp.float32) * scale

        params["blocks"].append({
            "pre_norm": jnp.ones((1, EMBED_DIM), jnp.float32),
            "post_norm": jnp.ones((1, EMBED_DIM), jnp.float32),
            "w_big_t": w_big.T.astype(jnp.bfloat16),                  # (D, 448)
            "wo_t": (jax.random.normal(k1, (EMBED_DIM, Q_WIDTH),
                                       jnp.float32) * scale).T.astype(jnp.bfloat16),
            "w13_t": jnp.concatenate([w1.T, w3.T], axis=1).astype(jnp.bfloat16),
            "w2_t": w2.T.astype(jnp.bfloat16),                        # (I, D)
        })
    return params


def build_rope_cache(size, dim, base):
    theta = 1.0 / (base ** (np.arange(0, dim, 2, dtype=np.float32) / dim))
    idx_theta = np.outer(np.arange(size, dtype=np.float32), theta)    # (size, dim/2)
    return (jnp.asarray(np.cos(idx_theta), dtype=jnp.float32),
            jnp.asarray(np.sin(idx_theta), dtype=jnp.float32))


def build_causal_mask_cache(size):
    mask = np.where(np.triu(np.ones((size, size), dtype=np.float32), k=1) > 0,
                    np.float32(NEG_MASK), np.float32(0.0))
    return jnp.asarray(mask)


# ----------------------------------------------------------------------------
# Full forward pass (matches ToyModelWithKVCache.forward semantics).
# input_pos must be a contiguous arange (prefill / single-token decode), as in
# the reference model's usage; only its start offset is used for cache/RoPE/mask.
# ----------------------------------------------------------------------------
def toy_model_forward(params, tokens, input_pos, kv_cache):
    x = params["tok_embedding"][tokens]                # (B, T, D) embedding gather
    pos = input_pos[:1].astype(jnp.int32)              # (1,) start position scalar

    new_cache = []
    for i in range(NUM_LAYERS):
        blk = params["blocks"][i]
        x, kv = transformer_layer(x, kv_cache[i], pos, params["cos_tab"],
                                  params["sin_tab"], params["mask"], blk)
        new_cache.append(kv)

    logits = final_norm_lm_head(x, params["final_norm"], params["lm_head_t"])
    return logits, new_cache


# One program: embedding gather + 2 fused layer kernels + lm_head kernel;
# KV cache donated so it is updated in place across steps.
forward_jit = jax.jit(toy_model_forward, donate_argnums=(3,))


if __name__ == "__main__":
    root = jax.random.PRNGKey(0)
    k_params, k_tok = jax.random.split(root)

    params = init_params(k_params)

    tokens = jax.random.randint(k_tok, (BATCH, SEQ_LEN), 0, VOCAB_SIZE,
                                dtype=jnp.int32)
    input_pos = jnp.arange(SEQ_LEN, dtype=jnp.int32)
    # packed per-layer KV cache: (B, S, K|V) = (1, 32, 128)
    kv_cache = [jnp.zeros((BATCH, MAX_SEQ_LEN, KV_PACK), jnp.float32)
                for _ in range(NUM_LAYERS)]

    logits, new_kv = forward_jit(params, tokens, input_pos, kv_cache)
    jax.block_until_ready(logits)
    jax.block_until_ready(new_kv)

    assert logits.shape == (BATCH, SEQ_LEN, VOCAB_SIZE)
    assert len(new_kv) == NUM_LAYERS
    assert new_kv[0].shape == (BATCH, MAX_SEQ_LEN, KV_PACK)
    assert bool(jnp.all(jnp.isfinite(logits)))
    print("KERNEL_OK")
</pallas_src>

<mosaic_0001>
module attributes {stable_mosaic.version = 11 : i64} {
  func.func @layer_kernel(%arg0: memref<1xi32, #tpu.memory_space<smem>>, %arg1: memref<1x8x128xf32, #tpu.memory_space<vmem>>, %arg2: memref<1x32x128xf32, #tpu.memory_space<vmem>>, %arg3: memref<32x128xf32, #tpu.memory_space<vmem>>, %arg4: memref<32x128xf32, #tpu.memory_space<vmem>>, %arg5: memref<32x32xf32, #tpu.memory_space<vmem>>, %arg6: memref<1x128xf32, #tpu.memory_space<vmem>>, %arg7: memref<128x448xbf16, #tpu.memory_space<vmem>>, %arg8: memref<128x128xbf16, #tpu.memory_space<vmem>>, %arg9: memref<1x128xf32, #tpu.memory_space<vmem>>, %arg10: memref<128x512xbf16, #tpu.memory_space<vmem>>, %arg11: memref<256x128xbf16, #tpu.memory_space<vmem>>, %arg12: memref<1x8x128xf32, #tpu.memory_space<vmem>>, %arg13: memref<1x32x128xf32, #tpu.memory_space<vmem>>) attributes {dimension_semantics = [], scalar_prefetch = 0 : i64, scratch_operands = 0 : i64, tpu.core_type = #tpu.core_type<tc>} {
    %c0 = arith.constant 0 : index
    %0 = memref.load %arg0[%c0] : memref<1xi32, #tpu.memory_space<smem>>
    %c0_0 = arith.constant 0 : index
    %c0_1 = arith.constant 0 : index
    %c0_2 = arith.constant 0 : index
    %1 = vector.load %arg1[%c0_0, %c0_1, %c0_2] : memref<1x8x128xf32, #tpu.memory_space<vmem>>, vector<1x8x128xf32>
    %c0_3 = arith.constant 0 : index
    %c0_4 = arith.constant 0 : index
    %2 = vector.load %arg6[%c0_3, %c0_4] : memref<1x128xf32, #tpu.memory_space<vmem>>, vector<1x128xf32>
    %3 = arith.mulf %1, %1 : vector<1x8x128xf32>
    %cst = arith.constant dense<0.000000e+00> : vector<1x8xf32>
    %4 = vector.multi_reduction <add>, %3, %cst [2] : vector<1x8x128xf32> to vector<1x8xf32>
    %5 = vector.shape_cast %4 : vector<1x8xf32> to vector<1x8x1xf32>
    %cst_5 = arith.constant 1.280000e+02 : f32
    %6 = vector.broadcast %cst_5 : f32 to vector<1x8x1xf32>
    %7 = arith.divf %5, %6 : vector<1x8x1xf32>
    %cst_6 = arith.constant 9.99999974E-6 : f32
    %8 = vector.broadcast %cst_6 : f32 to vector<1x8x1xf32>
    %9 = arith.addf %7, %8 : vector<1x8x1xf32>
    %10 = math.rsqrt %9 : vector<1x8x1xf32>
    %11 = vector.broadcast %10 : vector<1x8x1xf32> to vector<1x8x128xf32>
    %12 = arith.mulf %1, %11 : vector<1x8x128xf32>
    %13 = vector.shape_cast %2 : vector<1x128xf32> to vector<1x1x128xf32>
    %14 = vector.broadcast %13 : vector<1x1x128xf32> to vector<1x8x128xf32>
    %15 = arith.mulf %12, %14 : vector<1x8x128xf32>
    %16 = vector.shape_cast %15 : vector<1x8x128xf32> to vector<8x128xf32>
    %17 = arith.truncf %16 : vector<8x128xf32> to vector<8x128xbf16>
    %c0_7 = arith.constant 0 : index
    %c0_8 = arith.constant 0 : index
    %18 = vector.load %arg7[%c0_7, %c0_8] : memref<128x448xbf16, #tpu.memory_space<vmem>>, vector<128x448xbf16>
    %cst_9 = arith.constant dense<0.000000e+00> : vector<8x448xf32>
    %19 = tpu.matmul %17, %18, %cst_9 {dimension_numbers = #tpu.dot_dimension_numbers<[1], [0], [0], [1], [0, 0, 1, 1], [], []>} : vector<8x128xbf16>, vector<128x448xbf16>, vector<8x448xf32> -> vector<8x448xf32>
    %20 = vector.shape_cast %19 : vector<8x448xf32> to vector<1x8x448xf32>
    %21 = vector.extract_strided_slice %20 {offsets = [0, 0, 0], sizes = [1, 8, 128], strides = [1, 1, 1]} : vector<1x8x448xf32> to vector<1x8x128xf32>
    %22 = vector.extract_strided_slice %20 {offsets = [0, 0, 128], sizes = [1, 8, 64], strides = [1, 1, 1]} : vector<1x8x448xf32> to vector<1x8x64xf32>
    %23 = vector.extract_strided_slice %20 {offsets = [0, 0, 192], sizes = [1, 8, 64], strides = [1, 1, 1]} : vector<1x8x448xf32> to vector<1x8x64xf32>
    %24 = vector.extract_strided_slice %20 {offsets = [0, 0, 256], sizes = [1, 8, 128], strides = [1, 1, 1]} : vector<1x8x448xf32> to vector<1x8x128xf32>
    %25 = vector.extract_strided_slice %20 {offsets = [0, 0, 384], sizes = [1, 8, 64], strides = [1, 1, 1]} : vector<1x8x448xf32> to vector<1x8x64xf32>
    %26 = arith.index_cast %0 : i32 to index
    %c0_10 = arith.constant 0 : index
    %27 = vector.load %arg3[%26, %c0_10] : memref<32x128xf32, #tpu.memory_space<vmem>>, vector<8x128xf32>
    %28 = vector.shape_cast %27 : vector<8x128xf32> to vector<1x8x128xf32>
    %29 = arith.index_cast %0 : i32 to index
    %c0_11 = arith.constant 0 : index
    %30 = vector.load %arg4[%29, %c0_11] : memref<32x128xf32, #tpu.memory_space<vmem>>, vector<8x128xf32>
    %31 = vector.shape_cast %30 : vector<8x128xf32> to vector<1x8x128xf32>
    %32 = arith.mulf %21, %28 : vector<1x8x128xf32>
    %33 = arith.mulf %24, %31 : vector<1x8x128xf32>
    %34 = arith.addf %32, %33 : vector<1x8x128xf32>
    %35 = vector.extract_strided_slice %28 {offsets = [0, 0, 0], sizes = [1, 8, 64], strides = [1, 1, 1]} : vector<1x8x128xf32> to vector<1x8x64xf32>
    %36 = arith.mulf %22, %35 : vector<1x8x64xf32>
    %37 = vector.extract_strided_slice %31 {offsets = [0, 0, 0], sizes = [1, 8, 64], strides = [1, 1, 1]} : vector<1x8x128xf32> to vector<1x8x64xf32>
    %38 = arith.mulf %25, %37 : vector<1x8x64xf32>
    %39 = arith.addf %36, %38 : vector<1x8x64xf32>
    %c0_12 = arith.constant 0 : index
    %c0_13 = arith.constant 0 : index
    %c0_14 = arith.constant 0 : index
    %40 = vector.load %arg2[%c0_12, %c0_13, %c0_14] : memref<1x32x128xf32, #tpu.memory_space<vmem>>, vector<1x32x128xf32>
    %c0_15 = arith.constant 0 : index
    %c0_16 = arith.constant 0 : index
    %c0_17 = arith.constant 0 : index
    %41 = vector.load %arg13[%c0_15, %c0_16, %c0_17] : memref<1x32x128xf32, #tpu.memory_space<vmem>>, vector<1x32x128xf32>
    tpu.vector_store %arg13[%c0_15, %c0_16, %c0_17], %40 {strides = array<i32>} : memref<1x32x128xf32, #tpu.memory_space<vmem>>, vector<1x32x128xf32>,
    %42 = tpu.concatenate %39, %23 in 2 : vector<1x8x64xf32>, vector<1x8x64xf32> -> vector<1x8x128xf32>
    %c0_18 = arith.constant 0 : index
    %43 = arith.index_cast %0 : i32 to index
    %c0_19 = arith.constant 0 : index
    %44 = vector.load %arg13[%c0_18, %43, %c0_19] : memref<1x32x128xf32, #tpu.memory_space<vmem>>, vector<1x8x128xf32>
    tpu.vector_store %arg13[%c0_18, %43, %c0_19], %42 {strides = array<i32>} : memref<1x32x128xf32, #tpu.memory_space<vmem>>, vector<1x8x128xf32>,
    %c0_20 = arith.constant 0 : index
    %c0_21 = arith.constant 0 : index
    %c0_22 = arith.constant 0 : index
    %45 = vector.load %arg13[%c0_20, %c0_21, %c0_22] : memref<1x32x128xf32, #tpu.memory_space<vmem>>, vector<1x32x128xf32>
    %46 = arith.index_cast %0 : i32 to index
    %c0_23 = arith.constant 0 : index
    %47 = vector.load %arg5[%46, %c0_23] : memref<32x32xf32, #tpu.memory_space<vmem>>, vector<8x32xf32>
    %48 = tpu.concatenate %47, %47 in 0 : vector<8x32xf32>, vector<8x32xf32> -> vector<16x32xf32>
    %49 = vector.shape_cast %48 : vector<16x32xf32> to vector<1x16x32xf32>
    %cst_24 = arith.constant 0.000000e+00 : f32
    %50 = vector.broadcast %cst_24 : f32 to vector<8x128xf32>
    %51 = vector.extract_strided_slice %45 {offsets = [0, 0, 0], sizes = [1, 32, 16], strides = [1, 1, 1]} : vector<1x32x128xf32> to vector<1x32x16xf32>
    %52 = vector.extract_strided_slice %45 {offsets = [0, 0, 64], sizes = [1, 32, 16], strides = [1, 1, 1]} : vector<1x32x128xf32> to vector<1x32x16xf32>
    %53 = vector.extract_strided_slice %34 {offsets = [0, 0, 0], sizes = [1, 8, 16], strides = [1, 1, 1]} : vector<1x8x128xf32> to vector<1x8x16xf32>
    %54 = vector.extract_strided_slice %34 {offsets = [0, 0, 16], sizes = [1, 8, 16], strides = [1, 1, 1]} : vector<1x8x128xf32> to vector<1x8x16xf32>
    %55 = tpu.concatenate %53, %54 in 1 : vector<1x8x16xf32>, vector<1x8x16xf32> -> vector<1x16x16xf32>
    "tpu.trace_start"() <{level = 10 : i32, message = "btd,bsd->bts"}> : () -> ()
    %cst_25 = arith.constant dense<0.000000e+00> : vector<1x16x32xf32>
    %56 = tpu.matmul %55, %51, %cst_25 {dimension_numbers = #tpu.dot_dimension_numbers<[2], [2], [1], [1], [0, 0, 0, 1, 1, 1], [0], [0]>} : vector<1x16x16xf32>, vector<1x32x16xf32>, vector<1x16x32xf32> -> vector<1x16x32xf32>
    "tpu.trace_stop"() : () -> ()
    %cst_26 = arith.constant 2.500000e-01 : f32
    %57 = vector.broadcast %cst_26 : f32 to vector<1x16x32xf32>
    %58 = arith.mulf %56, %57 : vector<1x16x32xf32>
    %59 = arith.addf %58, %49 : vector<1x16x32xf32>
    %cst_27 = arith.constant dense<0xFF800000> : vector<1x16xf32>
    %60 = vector.multi_reduction <maximumf>, %59, %cst_27 [2] : vector<1x16x32xf32> to vector<1x16xf32>
    %61 = vector.shape_cast %60 : vector<1x16xf32> to vector<1x16x1xf32>
    %62 = vector.broadcast %61 : vector<1x16x1xf32> to vector<1x16x32xf32>
    %63 = arith.subf %59, %62 : vector<1x16x32xf32>
    %64 = math.exp %63 : vector<1x16x32xf32>
    %cst_28 = arith.constant dense<0.000000e+00> : vector<1x16xf32>
    %65 = vector.multi_reduction <add>, %64, %cst_28 [2] : vector<1x16x32xf32> to vector<1x16xf32>
    %66 = vector.shape_cast %65 : vector<1x16xf32> to vector<1x16x1xf32>
    %67 = tpu.reciprocal %66 {approx = true} : vector<1x16x1xf32> -> vector<1x16x1xf32>
    %68 = vector.broadcast %67 : vector<1x16x1xf32> to vector<1x16x32xf32>
    %69 = arith.mulf %64, %68 : vector<1x16x32xf32>
    "tpu.trace_start"() <{level = 10 : i32, message = "bts,bsd->btd"}> : () -> ()
    %cst_29 = arith.constant dense<0.000000e+00> : vector<1x16x16xf32>
    %70 = tpu.matmul %69, %52, %cst_29 {dimension_numbers = #tpu.dot_dimension_numbers<[2], [1], [1], [2], [0, 0, 0, 1, 1, 2], [0], [0]>} : vector<1x16x32xf32>, vector<1x32x16xf32>, vector<1x16x16xf32> -> vector<1x16x16xf32>
    "tpu.trace_stop"() : () -> ()
    %71 = vector.extract_strided_slice %70 {offsets = [0, 0, 0], sizes = [1, 8, 16], strides = [1, 1, 1]} : vector<1x16x16xf32> to vector<1x8x16xf32>
    %72 = vector.extract_strided_slice %70 {offsets = [0, 8, 0], sizes = [1, 8, 16], strides = [1, 1, 1]} : vector<1x16x16xf32> to vector<1x8x16xf32>
    %73 = tpu.concatenate %71, %72 in 2 : vector<1x8x16xf32>, vector<1x8x16xf32> -> vector<1x8x32xf32>
    %74 = vector.shape_cast %73 : vector<1x8x32xf32> to vector<8x32xf32>
    %75 = arith.truncf %74 : vector<8x32xf32> to vector<8x32xbf16>
    %c0_30 = arith.constant 0 : index
    %c0_31 = arith.constant 0 : index
    %76 = vector.load %arg8[%c0_30, %c0_31] : memref<128x128xbf16, #tpu.memory_space<vmem>>, vector<32x128xbf16>
    %cst_32 = arith.constant dense<0.000000e+00> : vector<8x128xf32>
    %77 = tpu.matmul %75, %76, %cst_32 {dimension_numbers = #tpu.dot_dimension_numbers<[1], [0], [0], [1], [0, 0, 1, 1], [], []>} : vector<8x32xbf16>, vector<32x128xbf16>, vector<8x128xf32> -> vector<8x128xf32>
    %78 = arith.addf %50, %77 : vector<8x128xf32>
    %79 = vector.extract_strided_slice %45 {offsets = [0, 0, 16], sizes = [1, 32, 16], strides = [1, 1, 1]} : vector<1x32x128xf32> to vector<1x32x16xf32>
    %80 = vector.extract_strided_slice %45 {offsets = [0, 0, 80], sizes = [1, 32, 16], strides = [1, 1, 1]} : vector<1x32x128xf32> to vector<1x32x16xf32>
    %81 = vector.extract_strided_slice %34 {offsets = [0, 0, 32], sizes = [1, 8, 16], strides = [1, 1, 1]} : vector<1x8x128xf32> to vector<1x8x16xf32>
    %82 = vector.extract_strided_slice %34 {offsets = [0, 0, 48], sizes = [1, 8, 16], strides = [1, 1, 1]} : vector<1x8x128xf32> to vector<1x8x16xf32>
    %83 = tpu.concatenate %81, %82 in 1 : vector<1x8x16xf32>, vector<1x8x16xf32> -> vector<1x16x16xf32>
    "tpu.trace_start"() <{level = 10 : i32, message = "btd,bsd->bts"}> : () -> ()
    %cst_33 = arith.constant dense<0.000000e+00> : vector<1x16x32xf32>
    %84 = tpu.matmul %83, %79, %cst_33 {dimension_numbers = #tpu.dot_dimension_numbers<[2], [2], [1], [1], [0, 0, 0, 1, 1, 1], [0], [0]>} : vector<1x16x16xf32>, vector<1x32x16xf32>, vector<1x16x32xf32> -> vector<1x16x32xf32>
    "tpu.trace_stop"() : () -> ()
    %cst_34 = arith.constant 2.500000e-01 : f32
    %85 = vector.broadcast %cst_34 : f32 to vector<1x16x32xf32>
    %86 = arith.mulf %84, %85 : vector<1x16x32xf32>
    %87 = arith.addf %86, %49 : vector<1x16x32xf32>
    %cst_35 = arith.constant dense<0xFF800000> : vector<1x16xf32>
    %88 = vector.multi_reduction <maximumf>, %87, %cst_35 [2] : vector<1x16x32xf32> to vector<1x16xf32>
    %89 = vector.shape_cast %88 : vector<1x16xf32> to vector<1x16x1xf32>
    %90 = vector.broadcast %89 : vector<1x16x1xf32> to vector<1x16x32xf32>
    %91 = arith.subf %87, %90 : vector<1x16x32xf32>
    %92 = math.exp %91 : vector<1x16x32xf32>
    %cst_36 = arith.constant dense<0.000000e+00> : vector<1x16xf32>
    %93 = vector.multi_reduction <add>, %92, %cst_36 [2] : vector<1x16x32xf32> to vector<1x16xf32>
    %94 = vector.shape_cast %93 : vector<1x16xf32> to vector<1x16x1xf32>
    %95 = tpu.reciprocal %94 {approx = true} : vector<1x16x1xf32> -> vector<1x16x1xf32>
    %96 = vector.broadcast %95 : vector<1x16x1xf32> to vector<1x16x32xf32>
    %97 = arith.mulf %92, %96 : vector<1x16x32xf32>
    "tpu.trace_start"() <{level = 10 : i32, message = "bts,bsd->btd"}> : () -> ()
    %cst_37 = arith.constant dense<0.000000e+00> : vector<1x16x16xf32>
    %98 = tpu.matmul %97, %80, %cst_37 {dimension_numbers = #tpu.dot_dimension_numbers<[2], [1], [1], [2], [0, 0, 0, 1, 1, 2], [0], [0]>} : vector<1x16x32xf32>, vector<1x32x16xf32>, vector<1x16x16xf32> -> vector<1x16x16xf32>
    "tpu.trace_stop"() : () -> ()
    %99 = vector.extract_strided_slice %98 {offsets = [0, 0, 0], sizes = [1, 8, 16], strides = [1, 1, 1]} : vector<1x16x16xf32> to vector<1x8x16xf32>
    %100 = vector.extract_strided_slice %98 {offsets = [0, 8, 0], sizes = [1, 8, 16], strides = [1, 1, 1]} : vector<1x16x16xf32> to vector<1x8x16xf32>
    %101 = tpu.concatenate %99, %100 in 2 : vector<1x8x16xf32>, vector<1x8x16xf32> -> vector<1x8x32xf32>
    %102 = vector.shape_cast %101 : vector<1x8x32xf32> to vector<8x32xf32>
    %103 = arith.truncf %102 : vector<8x32xf32> to vector<8x32xbf16>
    %c32 = arith.constant 32 : index
    %c0_38 = arith.constant 0 : index
    %104 = vector.load %arg8[%c32, %c0_38] : memref<128x128xbf16, #tpu.memory_space<vmem>>, vector<32x128xbf16>
    %cst_39 = arith.constant dense<0.000000e+00> : vector<8x128xf32>
    %105 = tpu.matmul %103, %104, %cst_39 {dimension_numbers = #tpu.dot_dimension_numbers<[1], [0], [0], [1], [0, 0, 1, 1], [], []>} : vector<8x32xbf16>, vector<32x128xbf16>, vector<8x128xf32> -> vector<8x128xf32>
    %106 = arith.addf %78, %105 : vector<8x128xf32>
    %107 = vector.extract_strided_slice %45 {offsets = [0, 0, 32], sizes = [1, 32, 16], strides = [1, 1, 1]} : vector<1x32x128xf32> to vector<1x32x16xf32>
    %108 = vector.extract_strided_slice %45 {offsets = [0, 0, 96], sizes = [1, 32, 16], strides = [1, 1, 1]} : vector<1x32x128xf32> to vector<1x32x16xf32>
    %109 = vector.extract_strided_slice %34 {offsets = [0, 0, 64], sizes = [1, 8, 16], strides = [1, 1, 1]} : vector<1x8x128xf32> to vector<1x8x16xf32>
    %110 = vector.extract_strided_slice %34 {offsets = [0, 0, 80], sizes = [1, 8, 16], strides = [1, 1, 1]} : vector<1x8x128xf32> to vector<1x8x16xf32>
    %111 = tpu.concatenate %109, %110 in 1 : vector<1x8x16xf32>, vector<1x8x16xf32> -> vector<1x16x16xf32>
    "tpu.trace_start"() <{level = 10 : i32, message = "btd,bsd->bts"}> : () -> ()
    %cst_40 = arith.constant dense<0.000000e+00> : vector<1x16x32xf32>
    %112 = tpu.matmul %111, %107, %cst_40 {dimension_numbers = #tpu.dot_dimension_numbers<[2], [2], [1], [1], [0, 0, 0, 1, 1, 1], [0], [0]>} : vector<1x16x16xf32>, vector<1x32x16xf32>, vector<1x16x32xf32> -> vector<1x16x32xf32>
    "tpu.trace_stop"() : () -> ()
    %cst_41 = arith.constant 2.500000e-01 : f32
    %113 = vector.broadcast %cst_41 : f32 to vector<1x16x32xf32>
    %114 = arith.mulf %112, %113 : vector<1x16x32xf32>
    %115 = arith.addf %114, %49 : vector<1x16x32xf32>
    %cst_42 = arith.constant dense<0xFF800000> : vector<1x16xf32>
    %116 = vector.multi_reduction <maximumf>, %115, %cst_42 [2] : vector<1x16x32xf32> to vector<1x16xf32>
    %117 = vector.shape_cast %116 : vector<1x16xf32> to vector<1x16x1xf32>
    %118 = vector.broadcast %117 : vector<1x16x1xf32> to vector<1x16x32xf32>
    %119 = arith.subf %115, %118 : vector<1x16x32xf32>
    %120 = math.exp %119 : vector<1x16x32xf32>
    %cst_43 = arith.constant dense<0.000000e+00> : vector<1x16xf32>
    %121 = vector.multi_reduction <add>, %120, %cst_43 [2] : vector<1x16x32xf32> to vector<1x16xf32>
    %122 = vector.shape_cast %121 : vector<1x16xf32> to vector<1x16x1xf32>
    %123 = tpu.reciprocal %122 {approx = true} : vector<1x16x1xf32> -> vector<1x16x1xf32>
    %124 = vector.broadcast %123 : vector<1x16x1xf32> to vector<1x16x32xf32>
    %125 = arith.mulf %120, %124 : vector<1x16x32xf32>
    "tpu.trace_start"() <{level = 10 : i32, message = "bts,bsd->btd"}> : () -> ()
    %cst_44 = arith.constant dense<0.000000e+00> : vector<1x16x16xf32>
    %126 = tpu.matmul %125, %108, %cst_44 {dimension_numbers = #tpu.dot_dimension_numbers<[2], [1], [1], [2], [0, 0, 0, 1, 1, 2], [0], [0]>} : vector<1x16x32xf32>, vector<1x32x16xf32>, vector<1x16x16xf32> -> vector<1x16x16xf32>
    "tpu.trace_stop"() : () -> ()
    %127 = vector.extract_strided_slice %126 {offsets = [0, 0, 0], sizes = [1, 8, 16], strides = [1, 1, 1]} : vector<1x16x16xf32> to vector<1x8x16xf32>
    %128 = vector.extract_strided_slice %126 {offsets = [0, 8, 0], sizes = [1, 8, 16], strides = [1, 1, 1]} : vector<1x16x16xf32> to vector<1x8x16xf32>
    %129 = tpu.concatenate %127, %128 in 2 : vector<1x8x16xf32>, vector<1x8x16xf32> -> vector<1x8x32xf32>
    %130 = vector.shape_cast %129 : vector<1x8x32xf32> to vector<8x32xf32>
    %131 = arith.truncf %130 : vector<8x32xf32> to vector<8x32xbf16>
    %c64 = arith.constant 64 : index
    %c0_45 = arith.constant 0 : index
    %132 = vector.load %arg8[%c64, %c0_45] : memref<128x128xbf16, #tpu.memory_space<vmem>>, vector<32x128xbf16>
    %cst_46 = arith.constant dense<0.000000e+00> : vector<8x128xf32>
    %133 = tpu.matmul %131, %132, %cst_46 {dimension_numbers = #tpu.dot_dimension_numbers<[1], [0], [0], [1], [0, 0, 1, 1], [], []>} : vector<8x32xbf16>, vector<32x128xbf16>, vector<8x128xf32> -> vector<8x128xf32>
    %134 = arith.addf %106, %133 : vector<8x128xf32>
    %135 = vector.extract_strided_slice %45 {offsets = [0, 0, 48], sizes = [1, 32, 16], strides = [1, 1, 1]} : vector<1x32x128xf32> to vector<1x32x16xf32>
    %136 = vector.extract_strided_slice %45 {offsets = [0, 0, 112], sizes = [1, 32, 16], strides = [1, 1, 1]} : vector<1x32x128xf32> to vector<1x32x16xf32>
    %137 = vector.extract_strided_slice %34 {offsets = [0, 0, 96], sizes = [1, 8, 16], strides = [1, 1, 1]} : vector<1x8x128xf32> to vector<1x8x16xf32>
    %138 = vector.extract_strided_slice %34 {offsets = [0, 0, 112], sizes = [1, 8, 16], strides = [1, 1, 1]} : vector<1x8x128xf32> to vector<1x8x16xf32>
    %139 = tpu.concatenate %137, %138 in 1 : vector<1x8x16xf32>, vector<1x8x16xf32> -> vector<1x16x16xf32>
    "tpu.trace_start"() <{level = 10 : i32, message = "btd,bsd->bts"}> : () -> ()
    %cst_47 = arith.constant dense<0.000000e+00> : vector<1x16x32xf32>
    %140 = tpu.matmul %139, %135, %cst_47 {dimension_numbers = #tpu.dot_dimension_numbers<[2], [2], [1], [1], [0, 0, 0, 1, 1, 1], [0], [0]>} : vector<1x16x16xf32>, vector<1x32x16xf32>, vector<1x16x32xf32> -> vector<1x16x32xf32>
    "tpu.trace_stop"() : () -> ()
    %cst_48 = arith.constant 2.500000e-01 : f32
    %141 = vector.broadcast %cst_48 : f32 to vector<1x16x32xf32>
    %142 = arith.mulf %140, %141 : vector<1x16x32xf32>
    %143 = arith.addf %142, %49 : vector<1x16x32xf32>
    %cst_49 = arith.constant dense<0xFF800000> : vector<1x16xf32>
    %144 = vector.multi_reduction <maximumf>, %143, %cst_49 [2] : vector<1x16x32xf32> to vector<1x16xf32>
    %145 = vector.shape_cast %144 : vector<1x16xf32> to vector<1x16x1xf32>
    %146 = vector.broadcast %145 : vector<1x16x1xf32> to vector<1x16x32xf32>
    %147 = arith.subf %143, %146 : vector<1x16x32xf32>
    %148 = math.exp %147 : vector<1x16x32xf32>
    %cst_50 = arith.constant dense<0.000000e+00> : vector<1x16xf32>
    %149 = vector.multi_reduction <add>, %148, %cst_50 [2] : vector<1x16x32xf32> to vector<1x16xf32>
    %150 = vector.shape_cast %149 : vector<1x16xf32> to vector<1x16x1xf32>
    %151 = tpu.reciprocal %150 {approx = true} : vector<1x16x1xf32> -> vector<1x16x1xf32>
    %152 = vector.broadcast %151 : vector<1x16x1xf32> to vector<1x16x32xf32>
    %153 = arith.mulf %148, %152 : vector<1x16x32xf32>
    "tpu.trace_start"() <{level = 10 : i32, message = "bts,bsd->btd"}> : () -> ()
    %cst_51 = arith.constant dense<0.000000e+00> : vector<1x16x16xf32>
    %154 = tpu.matmul %153, %136, %cst_51 {dimension_numbers = #tpu.dot_dimension_numbers<[2], [1], [1], [2], [0, 0, 0, 1, 1, 2], [0], [0]>} : vector<1x16x32xf32>, vector<1x32x16xf32>, vector<1x16x16xf32> -> vector<1x16x16xf32>
    "tpu.trace_stop"() : () -> ()
    %155 = vector.extract_strided_slice %154 {offsets = [0, 0, 0], sizes = [1, 8, 16], strides = [1, 1, 1]} : vector<1x16x16xf32> to vector<1x8x16xf32>
    %156 = vector.extract_strided_slice %154 {offsets = [0, 8, 0], sizes = [1, 8, 16], strides = [1, 1, 1]} : vector<1x16x16xf32> to vector<1x8x16xf32>
    %157 = tpu.concatenate %155, %156 in 2 : vector<1x8x16xf32>, vector<1x8x16xf32> -> vector<1x8x32xf32>
    %158 = vector.shape_cast %157 : vector<1x8x32xf32> to vector<8x32xf32>
    %159 = arith.truncf %158 : vector<8x32xf32> to vector<8x32xbf16>
    %c96 = arith.constant 96 : index
    %c0_52 = arith.constant 0 : index
    %160 = vector.load %arg8[%c96, %c0_52] : memref<128x128xbf16, #tpu.memory_space<vmem>>, vector<32x128xbf16>
    %cst_53 = arith.constant dense<0.000000e+00> : vector<8x128xf32>
    %161 = tpu.matmul %159, %160, %cst_53 {dimension_numbers = #tpu.dot_dimension_numbers<[1], [0], [0], [1], [0, 0, 1, 1], [], []>} : vector<8x32xbf16>, vector<32x128xbf16>, vector<8x128xf32> -> vector<8x128xf32>
    %162 = arith.addf %134, %161 : vector<8x128xf32>
    %163 = vector.shape_cast %162 : vector<8x128xf32> to vector<1x8x128xf32>
    %164 = arith.addf %1, %163 : vector<1x8x128xf32>
    %c0_54 = arith.constant 0 : index
    %c0_55 = arith.constant 0 : index
    %165 = vector.load %arg9[%c0_54, %c0_55] : memref<1x128xf32, #tpu.memory_space<vmem>>, vector<1x128xf32>
    %166 = arith.mulf %164, %164 : vector<1x8x128xf32>
    %cst_56 = arith.constant dense<0.000000e+00> : vector<1x8xf32>
    %167 = vector.multi_reduction <add>, %166, %cst_56 [2] : vector<1x8x128xf32> to vector<1x8xf32>
    %168 = vector.shape_cast %167 : vector<1x8xf32> to vector<1x8x1xf32>
    %cst_57 = arith.constant 1.280000e+02 : f32
    %169 = vector.broadcast %cst_57 : f32 to vector<1x8x1xf32>
    %170 = arith.divf %168, %169 : vector<1x8x1xf32>
    %cst_58 = arith.constant 9.99999974E-6 : f32
    %171 = vector.broadcast %cst_58 : f32 to vector<1x8x1xf32>
    %172 = arith.addf %170, %171 : vector<1x8x1xf32>
    %173 = math.rsqrt %172 : vector<1x8x1xf32>
    %174 = vector.broadcast %173 : vector<1x8x1xf32> to vector<1x8x128xf32>
    %175 = arith.mulf %164, %174 : vector<1x8x128xf32>
    %176 = vector.shape_cast %165 : vector<1x128xf32> to vector<1x1x128xf32>
    %177 = vector.broadcast %176 : vector<1x1x128xf32> to vector<1x8x128xf32>
    %178 = arith.mulf %175, %177 : vector<1x8x128xf32>
    %179 = vector.shape_cast %178 : vector<1x8x128xf32> to vector<8x128xf32>
    %180 = arith.truncf %179 : vector<8x128xf32> to vector<8x128xbf16>
    %c0_59 = arith.constant 0 : index
    %c0_60 = arith.constant 0 : index
    %181 = vector.load %arg10[%c0_59, %c0_60] : memref<128x512xbf16, #tpu.memory_space<vmem>>, vector<128x512xbf16>
    %cst_61 = arith.constant dense<0.000000e+00> : vector<8x512xf32>
    %182 = tpu.matmul %180, %181, %cst_61 {dimension_numbers = #tpu.dot_dimension_numbers<[1], [0], [0], [1], [0, 0, 1, 1], [], []>} : vector<8x128xbf16>, vector<128x512xbf16>, vector<8x512xf32> -> vector<8x512xf32>
    %183 = vector.extract_strided_slice %182 {offsets = [0, 0], sizes = [8, 256], strides = [1, 1]} : vector<8x512xf32> to vector<8x256xf32>
    %184 = vector.extract_strided_slice %182 {offsets = [0, 256], sizes = [8, 256], strides = [1, 1]} : vector<8x512xf32> to vector<8x256xf32>
    %185 = arith.negf %183 : vector<8x256xf32>
    %186 = math.exp %185 : vector<8x256xf32>
    %cst_62 = arith.constant 1.000000e+00 : f32
    %187 = vector.broadcast %cst_62 : f32 to vector<8x256xf32>
    %188 = arith.addf %187, %186 : vector<8x256xf32>
    %189 = arith.divf %187, %188 : vector<8x256xf32>
    %190 = arith.mulf %183, %189 : vector<8x256xf32>
    %191 = arith.mulf %190, %184 : vector<8x256xf32>
    %192 = arith.truncf %191 : vector<8x256xf32> to vector<8x256xbf16>
    %c0_63 = arith.constant 0 : index
    %c0_64 = arith.constant 0 : index
    %193 = vector.load %arg11[%c0_63, %c0_64] : memref<256x128xbf16, #tpu.memory_space<vmem>>, vector<256x128xbf16>
    %cst_65 = arith.constant dense<0.000000e+00> : vector<8x128xf32>
    %194 = tpu.matmul %192, %193, %cst_65 {dimension_numbers = #tpu.dot_dimension_numbers<[1], [0], [0], [1], [0, 0, 1, 1], [], []>} : vector<8x256xbf16>, vector<256x128xbf16>, vector<8x128xf32> -> vector<8x128xf32>
    %195 = vector.shape_cast %194 : vector<8x128xf32> to vector<1x8x128xf32>
    %196 = arith.addf %164, %195 : vector<1x8x128xf32>
    %c0_66 = arith.constant 0 : index
    %c0_67 = arith.constant 0 : index
    %c0_68 = arith.constant 0 : index
    %197 = vector.load %arg12[%c0_66, %c0_67, %c0_68] : memref<1x8x128xf32, #tpu.memory_space<vmem>>, vector<1x8x128xf32>
    tpu.vector_store %arg12[%c0_66, %c0_67, %c0_68], %196 {strides = array<i32>} : memref<1x8x128xf32, #tpu.memory_space<vmem>>, vector<1x8x128xf32>,
    return
  }
}

module attributes {stable_mosaic.version = 11 : i64} {
  func.func @lm_head_kernel(%arg0: i32, %arg1: memref<1x8x128xf32, #tpu.memory_space<vmem>>, %arg2: memref<1x128xf32, #tpu.memory_space<vmem>>, %arg3: memref<128x128xbf16, #tpu.memory_space<vmem>>, %arg4: memref<1x8x128xf32, #tpu.memory_space<vmem>>) attributes {dimension_semantics = [#tpu.dimension_semantics<parallel>], iteration_bounds = array<i64: 2>, scalar_prefetch = 0 : i64, scratch_operands = 0 : i64, tpu.core_type = #tpu.core_type<tc>, window_params = [{pipeline_mode = #tpu.pipeline_mode<synchronous>, transform_indices = @transform_0, window_bounds = array<i64: 1, 8, 128>}, {pipeline_mode = #tpu.pipeline_mode<synchronous>, transform_indices = @transform_1, window_bounds = array<i64: 1, 128>}, {transform_indices = @transform_2, window_bounds = array<i64: 128, 128>}, {transform_indices = @transform_3, window_bounds = array<i64: 1, 8, 128>}]} {
    %c0 = arith.constant 0 : index
    %c0_0 = arith.constant 0 : index
    %c0_1 = arith.constant 0 : index
    %0 = vector.load %arg1[%c0, %c0_0, %c0_1] : memref<1x8x128xf32, #tpu.memory_space<vmem>>, vector<1x8x128xf32>
    %c0_2 = arith.constant 0 : index
    %c0_3 = arith.constant 0 : index
    %1 = vector.load %arg2[%c0_2, %c0_3] : memref<1x128xf32, #tpu.memory_space<vmem>>, vector<1x128xf32>
    %2 = arith.mulf %0, %0 : vector<1x8x128xf32>
    %cst = arith.constant dense<0.000000e+00> : vector<1x8xf32>
    %3 = vector.multi_reduction <add>, %2, %cst [2] : vector<1x8x128xf32> to vector<1x8xf32>
    %4 = vector.shape_cast %3 : vector<1x8xf32> to vector<1x8x1xf32>
    %cst_4 = arith.constant 1.280000e+02 : f32
    %5 = vector.broadcast %cst_4 : f32 to vector<1x8x1xf32>
    %6 = arith.divf %4, %5 : vector<1x8x1xf32>
    %cst_5 = arith.constant 9.99999974E-6 : f32
    %7 = vector.broadcast %cst_5 : f32 to vector<1x8x1xf32>
    %8 = arith.addf %6, %7 : vector<1x8x1xf32>
    %9 = math.rsqrt %8 : vector<1x8x1xf32>
    %10 = vector.broadcast %9 : vector<1x8x1xf32> to vector<1x8x128xf32>
    %11 = arith.mulf %0, %10 : vector<1x8x128xf32>
    %12 = vector.shape_cast %1 : vector<1x128xf32> to vector<1x1x128xf32>
    %13 = vector.broadcast %12 : vector<1x1x128xf32> to vector<1x8x128xf32>
    %14 = arith.mulf %11, %13 : vector<1x8x128xf32>
    %15 = vector.shape_cast %14 : vector<1x8x128xf32> to vector<8x128xf32>
    %16 = arith.truncf %15 : vector<8x128xf32> to vector<8x128xbf16>
    %c0_6 = arith.constant 0 : index
    %c0_7 = arith.constant 0 : index
    %17 = vector.load %arg3[%c0_6, %c0_7] : memref<128x128xbf16, #tpu.memory_space<vmem>>, vector<128x128xbf16>
    %cst_8 = arith.constant dense<0.000000e+00> : vector<8x128xf32>
    %18 = tpu.matmul %16, %17, %cst_8 {dimension_numbers = #tpu.dot_dimension_numbers<[1], [0], [0], [1], [0, 0, 1, 1], [], []>} : vector<8x128xbf16>, vector<128x128xbf16>, vector<8x128xf32> -> vector<8x128xf32>
    %19 = vector.shape_cast %18 : vector<8x128xf32> to vector<1x8x128xf32>
    %c0_9 = arith.constant 0 : index
    %c0_10 = arith.constant 0 : index
    %c0_11 = arith.constant 0 : index
    %20 = vector.load %arg4[%c0_9, %c0_10, %c0_11] : memref<1x8x128xf32, #tpu.memory_space<vmem>>, vector<1x8x128xf32>
    tpu.vector_store %arg4[%c0_9, %c0_10, %c0_11], %19 {strides = array<i32>} : memref<1x8x128xf32, #tpu.memory_space<vmem>>, vector<1x8x128xf32>,
    return
  }
  func.func @transform_0(%arg0: i32) -> (i32, i32, i32) {
    %c0_i32 = arith.constant 0 : i32
    %c0_i32_0 = arith.constant 0 : i32
    %c0_i32_1 = arith.constant 0 : i32
    %c0_i32_2 = arith.constant 0 : i32
    return %c0_i32, %c0_i32_0, %c0_i32_1 : i32, i32, i32
  }
  func.func @transform_1(%arg0: i32) -> (i32, i32) {
    %c0_i32 = arith.constant 0 : i32
    %c0_i32_0 = arith.constant 0 : i32
    %c0_i32_1 = arith.constant 0 : i32
    return %c0_i32, %c0_i32_0 : i32, i32
  }
  func.func @transform_2(%arg0: i32) -> (i32, i32) {
    %c0_i32 = arith.constant 0 : i32
    %c0_i32_0 = arith.constant 0 : i32
    return %c0_i32, %arg0 : i32, i32
  }
  func.func @transform_3(%arg0: i32) -> (i32, i32, i32) {
    %c0_i32 = arith.constant 0 : i32
    %c0_i32_0 = arith.constant 0 : i32
    %c0_i32_1 = arith.constant 0 : i32
    return %c0_i32, %c0_i32_0, %arg0 : i32, i32, i32
  }
}

</mosaic_0001>

<llo_original>
// kernel: toy_model_forward.5
$region0: #{toy_model_forward.5}
  #allocation0 [shape = 'u32[]', space=smem, size = 0x4, offset = 0x4, fixed_abs, tag = 'smem constant byte address 0x4 - core index']
  #allocation1 [shape = 'u32[144,128]{1,0:T(1,128)}', space=vmem, size = 0x12000, scoped, tag = 'internal scratch']
  %s0 = inlined_call_operand.vmem [shape: f32[1,8,128], index: 0, kind: input, shape index: {}]
  %s1 = inlined_call_operand.vmem [shape: f32[1,128], index: 1, kind: input, shape index: {}]
  %s2 = inlined_call_operand.vmem [shape: bf16[128,256], index: 2, kind: input, shape index: {}]
  %s3 = inlined_call_operand.hbm [shape: f32[1,8,256], index: 3, kind: output, shape index: {}]
  %s4 = sld [smem:[#allocation0]]
  $region86: #{toy_model_forward.5} parent=0
    _
  %s6 = ssub.s32 1, %s4
  %s7 = scalar_select 0, %s6, %s4
  $region1: #{toy_model_forward.5} parent=0
    #allocation2 [shape = 'u8[65536]{0}', space=vmem, size = 0x10000, scoped, tag = 'input window, operand 2']
    #allocation3 [shape = 'u8[8192]{0}', space=vmem, size = 0x2000, scoped, tag = 'output window, operand 0']
    #allocation4 [shape = 's32[2]{0}', space=sflag, size = 0x8, scoped, tag = 'scoped memory for toy_model_forward.5']
    %8 = vsyncpa [#allocation4], 0
    %s9 = scalar_lea.sflag [#allocation4], 1
    %10 = vsyncpa %s9, 0
    loop: start=0, step=1, limit=4
    $region2: #{toy_model_forward.5} parent=1 // loop_pre_header
      _
    $region3: #{toy_model_forward.5} parent=1 // loop_header
      %s12 = sphi 0, %s16
      %p13 = scmp.ge.s32.totalorder %s12, 4
      %s20 = sphi 0, %s20
      %s22 = sphi 0, %s20
      %s23 = sphi 0, %s22
      %s37 = sphi 0, %s23
      %s41 = sphi 0, %s41
      %s43 = sphi 0, %s41
      %s44 = sphi 0, %s43
      %s58 = sphi 0, %s44
      %s64 = sphi 0, %s66
      %s67 = sphi 0, %s64
      %s68 = sphi 0, %s67
      %s84 = sphi 0, %s68
      %s90 = sphi 0, %s92
      %s93 = sphi 0, %s90
      %s94 = sphi 0, %s93
      %s110 = sphi 0, %s94
    $region4: #{toy_model_forward.5} parent=1 // loop_header_branch
      %15 = sbr.rel (%p13) target = $region8
    $region5: #{toy_model_forward.5} parent=1 // loop_body
      %s17 = ssub.s32 %s12, 1
      %s18 = ssub.s32 %s12, 2
      %s19 = sadd.s32 %s12, 1
      %s21 = sadd.s32 %s20, 1
      %p24 = scmp.eq.s32.totalorder %s12, 1
      %p25 = scmp.ne.s32.totalorder %s20, %s22
      %p26 = scmp.eq.s32.totalorder %s12, 0
      %p27 = por %p25, %p26
      %p28 = scmp.ne.s32.totalorder %s20, %s22
      %p29 = scmp.eq.s32.totalorder %s17, 1
      %p30 = por %p28, %p29
      %p31 = scmp.ne.s32.totalorder %s22, %s23
      %p32 = scmp.eq.s32.totalorder %s17, 0
      %p33 = por %p31, %p32
      %p34 = scmp.ne.s32.totalorder %s22, %s23
      %p35 = scmp.eq.s32.totalorder %s18, 1
      %p36 = por %p34, %p35
      %p38 = scmp.ne.s32.totalorder %s23, %s37
      %p39 = scmp.eq.s32.totalorder %s18, 0
      %p40 = por %p38, %p39
      %s42 = sadd.s32 %s41, 1
      %p45 = scmp.eq.s32.totalorder %s12, 1
      %p46 = scmp.ne.s32.totalorder %s41, %s43
      %p47 = scmp.eq.s32.totalorder %s12, 0
      %p48 = por %p46, %p47
      %p49 = scmp.ne.s32.totalorder %s41, %s43
      %p50 = scmp.eq.s32.totalorder %s17, 1
      %p51 = por %p49, %p50
      %p52 = scmp.ne.s32.totalorder %s43, %s44
      %p53 = scmp.eq.s32.totalorder %s17, 0
      %p54 = por %p52, %p53
      %p55 = scmp.ne.s32.totalorder %s43, %s44
      %p56 = scmp.eq.s32.totalorder %s18, 1
      %p57 = por %p55, %p56
      %p59 = scmp.ne.s32.totalorder %s44, %s58
      %p60 = scmp.eq.s32.totalorder %s18, 0
      %p61 = por %p59, %p60
      %s62 = ssub.s32 %s12, %s19
      %p63 = scmp.eq.s32.totalorder %s62, 0
      %s65 = sadd.s32 %s64, 1
      %s66 = scalar_select %p63, %s64, %s65
      %p69 = pneg %p63
      %p70 = scmp.eq.s32.totalorder %s12, 1
      %p71 = por %p69, %p70
      %p72 = scmp.ne.s32.totalorder %s64, %s67
      %p73 = scmp.eq.s32.totalorder %s12, 0
      %p74 = por %p72, %p73
      %p75 = scmp.ne.s32.totalorder %s64, %s67
      %p76 = scmp.eq.s32.totalorder %s17, 1
      %p77 = por %p75, %p76
      %p78 = scmp.ne.s32.totalorder %s67, %s68
      %p79 = scmp.eq.s32.totalorder %s17, 0
      %p80 = por %p78, %p79
      %p81 = scmp.ne.s32.totalorder %s67, %s68
      %p82 = scmp.eq.s32.totalorder %s18, 1
      %p83 = por %p81, %p82
      %p85 = scmp.ne.s32.totalorder %s68, %s84
      %p86 = scmp.eq.s32.totalorder %s18, 0
      %p87 = por %p85, %p86
      %s88 = ssub.s32 %s12, %s19
      %p89 = scmp.eq.s32.totalorder %s88, 0
      %s91 = sadd.s32 %s90, 1
      %s92 = scalar_select %p89, %s90, %s91
      %p95 = pneg %p89
      %p96 = scmp.eq.s32.totalorder %s12, 1
      %p97 = por %p95, %p96
      %p98 = scmp.ne.s32.totalorder %s90, %s93
      %p99 = scmp.eq.s32.totalorder %s12, 0
      %p100 = por %p98, %p99
      %p101 = scmp.ne.s32.totalorder %s90, %s93
      %p102 = scmp.eq.s32.totalorder %s17, 1
      %p103 = por %p101, %p102
      %p104 = scmp.ne.s32.totalorder %s93, %s94
      %p105 = scmp.eq.s32.totalorder %s17, 0
      %p106 = por %p104, %p105
      %p107 = scmp.ne.s32.totalorder %s93, %s94
      %p108 = scmp.eq.s32.totalorder %s18, 1
      %p109 = por %p107, %p108
      %p111 = scmp.ne.s32.totalorder %s94, %s110
      %p112 = scmp.eq.s32.totalorder %s18, 0
      %p113 = por %p111, %p112
      %p114 = scmp.le.s32.totalorder 1, %s12
      %p115 = scmp.lt.s32.totalorder %s12, 3
      %p116 = pnand %p114, %p115
      %p117 = pneg %p116
      // Predicated region
      $region9: #{toy_model_forward.5} parent=5 // pred_check
        _
      $region10: #{toy_model_forward.5} parent=5 // pred_check_branch
        %119 = sbr.rel (%p116) target = $region12
      $region11: #{toy_model_forward.5} parent=5 // pred_region
        %s120 = ssub.s32 %s12, 1
        // Predicated region
        $region13: #{toy_model_forward.5} parent=11 // pred_check
          %p121 = pneg %p33
        $region14: #{toy_model_forward.5} parent=11 // pred_check_branch
          %123 = sbr.rel (%p121) target = $region16
        $region15: #{toy_model_forward.5} parent=11 // pred_region
          _
        $region16: #{toy_model_forward.5} parent=11 // pred_fallthru
          _
        // Predicated region
        $region17: #{toy_model_forward.5} parent=11 // pred_check
          %p124 = pneg %p54
        $region18: #{toy_model_forward.5} parent=11 // pred_check_branch
          %126 = sbr.rel (%p124) target = $region20
        $region19: #{toy_model_forward.5} parent=11 // pred_region
          _
        $region20: #{toy_model_forward.5} parent=11 // pred_fallthru
          _
      $region12: #{toy_model_forward.5} parent=5 // pred_fallthru
        _
      %p127 = scmp.lt.s32.totalorder %s12, 2
      // Predicated region
      $region21: #{toy_model_forward.5} parent=5 // pred_check
        %p128 = pneg %p127
      $region22: #{toy_model_forward.5} parent=5 // pred_check_branch
        %130 = sbr.rel (%p128) target = $region24
      $region23: #{toy_model_forward.5} parent=5 // pred_region
        // Predicated region
        $region25: #{toy_model_forward.5} parent=23 // pred_check
          %p131 = pneg %p74
        $region26: #{toy_model_forward.5} parent=23 // pred_check_branch
          %133 = sbr.rel (%p131) target = $region28
        $region27: #{toy_model_forward.5} parent=23 // pred_region
          %s134 = sand.u32 %s64, 1
          %s135 = sand.u32 %s64, 1
          %s136 = smul.addr %s135, 64
          %s137 = scalar_lea.vmem [#allocation2], %s136
          %s138 = smul.addr %s12, 4
          %s139 = scalar_lea.vmem %s2, %s138
          // Predicated region
          $region29: #{toy_model_forward.5} parent=27 // pred_check
            _
          $region30: #{toy_model_forward.5} parent=27 // pred_check_branch
            %141 = sbr.rel (0) target = $region32
          $region31: #{toy_model_forward.5} parent=27 // pred_region
            // Predicated region
            $region33: #{toy_model_forward.5} parent=31 // pred_check
              _
            $region34: #{toy_model_forward.5} parent=31 // pred_check_branch
              %143 = sbr.rel target = $region36
            $region35: #{toy_model_forward.5} parent=31 // pred_region
              // Predicated region
              $region48: #{toy_model_forward.5} parent=35 // pred_check
                _
              $region49: #{toy_model_forward.5} parent=35 // pred_check_branch
                %188 = sbr.rel (0) target = $region51
              $region50: #{toy_model_forward.5} parent=35 // pred_region
                loop: start=0, step=1, limit=1
                $region52: #{toy_model_forward.5} parent=50 // loop_pre_header
                  _
                $region53: #{toy_model_forward.5} parent=50 // loop_header
                  %s190 = sphi 0, %s194
                  %p191 = scmp.ge.s32.totalorder %s190, 1
                  %s195 = sphi %s139, %s139
                  %s196 = sphi %s137, %s137
                $region54: #{toy_model_forward.5} parent=50 // loop_header_branch
                  %193 = sbr.rel (%p191) target = $region58
                $region55: #{toy_model_forward.5} parent=50 // loop_body
                  _
                $region56: #{toy_model_forward.5} parent=50 // loop_footer
                  %s194 = sadd.s32 1, %s190
                $region57: #{toy_model_forward.5} parent=50 // loop_footer_branch
                  %189 = sbr.rel target = $region53
                $region58: #{toy_model_forward.5} parent=50 // loop_exit
                  _
                loop: start=0, step=1, limit=1
                $region59: #{toy_model_forward.5} parent=50 // loop_pre_header
                  _
                $region60: #{toy_model_forward.5} parent=50 // loop_header
                  %s199 = sphi 0, %s203
                  %p200 = scmp.ge.s32.totalorder %s199, 1
                  %s204 = sphi %s139, %s139
                  %s205 = sphi %s137, %s137
                $region61: #{toy_model_forward.5} parent=50 // loop_header_branch
                  %202 = sbr.rel (%p200) target = $region65
                $region62: #{toy_model_forward.5} parent=50 // loop_body
                  %v206 = vld [vmem:[%s204] sm:$0xf]
                  %207 = vst [vmem:[%s205] sm:$0xf] %v206
                  %v208 = vld [vmem:[%s204 + $0x8] sm:$0xf]
                  %209 = vst [vmem:[%s205 + $0x4] sm:$0xf] %v208
                  %v210 = vld [vmem:[%s204 + $0x10] sm:$0xf]
                  %211 = vst [vmem:[%s205 + $0x8] sm:$0xf] %v210
                  %v212 = vld [vmem:[%s204 + $0x18] sm:$0xf]
                  %213 = vst [vmem:[%s205 + $0xc] sm:$0xf] %v212
                  %v214 = vld [vmem:[%s204 + $0x20] sm:$0xf]
                  %215 = vst [vmem:[%s205 + $0x10] sm:$0xf] %v214
                  %v216 = vld [vmem:[%s204 + $0x28] sm:$0xf]
                  %217 = vst [vmem:[%s205 + $0x14] sm:$0xf] %v216
                  %v218 = vld [vmem:[%s204 + $0x30] sm:$0xf]
                  %219 = vst [vmem:[%s205 + $0x18] sm:$0xf] %v218
                  %v220 = vld [vmem:[%s204 + $0x38] sm:$0xf]
                  %221 = vst [vmem:[%s205 + $0x1c] sm:$0xf] %v220
                  %v222 = vld [vmem:[%s204 + $0x40] sm:$0xf]
                  %223 = vst [vmem:[%s205 + $0x20] sm:$0xf] %v222
                  %v224 = vld [vmem:[%s204 + $0x48] sm:$0xf]
                  %225 = vst [vmem:[%s205 + $0x24] sm:$0xf] %v224
                  %v226 = vld [vmem:[%s204 + $0x50] sm:$0xf]
                  %227 = vst [vmem:[%s205 + $0x28] sm:$0xf] %v226
                  %v228 = vld [vmem:[%s204 + $0x58] sm:$0xf]
                  %229 = vst [vmem:[%s205 + $0x2c] sm:$0xf] %v228
                  %v230 = vld [vmem:[%s204 + $0x60] sm:$0xf]
                  %231 = vst [vmem:[%s205 + $0x30] sm:$0xf] %v230
                  %v232 = vld [vmem:[%s204 + $0x68] sm:$0xf]
                  %233 = vst [vmem:[%s205 + $0x34] sm:$0xf] %v232
                  %v234 = vld [vmem:[%s204 + $0x70] sm:$0xf]
                  %235 = vst [vmem:[%s205 + $0x38] sm:$0xf] %v234
                  %v236 = vld [vmem:[%s204 + $0x78] sm:$0xf]
                  %237 = vst [vmem:[%s205 + $0x3c] sm:$0xf] %v236
                $region63: #{toy_model_forward.5} parent=50 // loop_footer
                  %s203 = sadd.s32 1, %s199
                $region64: #{toy_model_forward.5} parent=50 // loop_footer_branch
                  %198 = sbr.rel target = $region60
                $region65: #{toy_model_forward.5} parent=50 // loop_exit
                  _
              $region51: #{toy_model_forward.5} parent=35 // pred_fallthru
                _
            $region36: #{toy_model_forward.5} parent=31 // pred_fallthru
              _
            // Predicated region
            $region37: #{toy_model_forward.5} parent=31 // pred_check
              _
            $region38: #{toy_model_forward.5} parent=31 // pred_check_branch
              %145 = sbr.rel (0) target = $region40
            $region39: #{toy_model_forward.5} parent=31 // pred_region
              loop: start=0, step=1, limit=1
              $region41: #{toy_model_forward.5} parent=39 // loop_pre_header
                _
              $region42: #{toy_model_forward.5} parent=39 // loop_header
                %s148 = sphi 0, %s152
                %p149 = scmp.ge.s32.totalorder %s148, 1
                %s153 = sphi %s139, %s139
                %s154 = sphi %s137, %s137
              $region43: #{toy_model_forward.5} parent=39 // loop_header_branch
                %151 = sbr.rel (%p149) target = $region47
              $region44: #{toy_model_forward.5} parent=39 // loop_body
                %v155 = vld [vmem:[%s153] sm:$0xf]
                %156 = vst [vmem:[%s154] sm:$0xf] %v155
                %v157 = vld [vmem:[%s153 + $0x8] sm:$0xf]
                %158 = vst [vmem:[%s154 + $0x4] sm:$0xf] %v157
                %v159 = vld [vmem:[%s153 + $0x10] sm:$0xf]
                %160 = vst [vmem:[%s154 + $0x8] sm:$0xf] %v159
                %v161 = vld [vmem:[%s153 + $0x18] sm:$0xf]
                %162 = vst [vmem:[%s154 + $0xc] sm:$0xf] %v161
                %v163 = vld [vmem:[%s153 + $0x20] sm:$0xf]
                %164 = vst [vmem:[%s154 + $0x10] sm:$0xf] %v163
                %v165 = vld [vmem:[%s153 + $0x28] sm:$0xf]
                %166 = vst [vmem:[%s154 + $0x14] sm:$0xf] %v165
                %v167 = vld [vmem:[%s153 + $0x30] sm:$0xf]
                %168 = vst [vmem:[%s154 + $0x18] sm:$0xf] %v167
                %v169 = vld [vmem:[%s153 + $0x38] sm:$0xf]
                %170 = vst [vmem:[%s154 + $0x1c] sm:$0xf] %v169
                %v171 = vld [vmem:[%s153 + $0x40] sm:$0xf]
                %172 = vst [vmem:[%s154 + $0x20] sm:$0xf] %v171
                %v173 = vld [vmem:[%s153 + $0x48] sm:$0xf]
                %174 = vst [vmem:[%s154 + $0x24] sm:$0xf] %v173
                %v175 = vld [vmem:[%s153 + $0x50] sm:$0xf]
                %176 = vst [vmem:[%s154 + $0x28] sm:$0xf] %v175
                %v177 = vld [vmem:[%s153 + $0x58] sm:$0xf]
                %178 = vst [vmem:[%s154 + $0x2c] sm:$0xf] %v177
                %v179 = vld [vmem:[%s153 + $0x60] sm:$0xf]
                %180 = vst [vmem:[%s154 + $0x30] sm:$0xf] %v179
                %v181 = vld [vmem:[%s153 + $0x68] sm:$0xf]
                %182 = vst [vmem:[%s154 + $0x34] sm:$0xf] %v181
                %v183 = vld [vmem:[%s153 + $0x70] sm:$0xf]
                %184 = vst [vmem:[%s154 + $0x38] sm:$0xf] %v183
                %v185 = vld [vmem:[%s153 + $0x78] sm:$0xf]
                %186 = vst [vmem:[%s154 + $0x3c] sm:$0xf] %v185
              $region45: #{toy_model_forward.5} parent=39 // loop_footer
                %s152 = sadd.s32 1, %s148
              $region46: #{toy_model_forward.5} parent=39 // loop_footer_branch
                %147 = sbr.rel target = $region42
              $region47: #{toy_model_forward.5} parent=39 // loop_exit
                _
            $region40: #{toy_model_forward.5} parent=31 // pred_fallthru
              _
          $region32: #{toy_model_forward.5} parent=27 // pred_fallthru
            _
          %238 = vnop
        $region28: #{toy_model_forward.5} parent=23 // pred_fallthru
          _
      $region24: #{toy_model_forward.5} parent=5 // pred_fallthru
        _
      %p239 = scmp.le.s32.totalorder 1, %s12
      %p240 = scmp.lt.s32.totalorder %s12, 3
      %p241 = pnand %p239, %p240
      %p242 = pneg %p241
      // Predicated region
      $region66: #{toy_model_forward.5} parent=5 // pred_check
        _
      $region67: #{toy_model_forward.5} parent=5 // pred_check_branch
        %244 = sbr.rel (%p241) target = $region69
      $region68: #{toy_model_forward.5} parent=5 // pred_region
        %s245 = ssub.s32 %s12, 1
        %s246 = sand.u32 %s67, 1
        %s247 = sand.u32 %s67, 1
        %s248 = smul.addr %s247, 64
        %s249 = scalar_lea.vmem [#allocation2], %s248
        // Predicated region
        $region70: #{toy_model_forward.5} parent=68 // pred_check
          %p250 = pneg %p80
        $region71: #{toy_model_forward.5} parent=68 // pred_check_branch
          %252 = sbr.rel (%p250) target = $region73
        $region72: #{toy_model_forward.5} parent=68 // pred_region
          _
        $region73: #{toy_model_forward.5} parent=68 // pred_fallthru
          _
        %p253 = pneg %p33
        %p254 = pneg %p30
        %p255 = pneg %p54
        %p256 = pneg %p51
        %s257 = sand.u32 %s67, 1
        %s258 = sand.u32 %s67, 1
        %s259 = smul.addr %s258, 64
        %s260 = scalar_lea.vmem [#allocation2], %s259
        %p261 = pneg %p80
        %p262 = pneg %p77
        %p263 = pneg %p106
        %p264 = pneg %p103
        %s265 = sand.u32 %s93, 1
        %s266 = scalar_lea.sflag [#allocation4], %s265
        %s267 = sand.u32 %s93, 1
        %s268 = smul.addr %s267, 8
        %s269 = scalar_lea.vmem [#allocation3], %s268
        %v271 = vld [vmem:[%s0] sm:$0xff]
        %v272 = vld [vmem:[%s1] sm:$0x1]
        %v273 = vmul.f32 %v271, %v271
        %274 = vadd.xlane.f32.xlu0 %v273
        %v275 = vpop.xlane.xlu0 %274
        %v276 = vrcp.pop 128.0
        %v277 = vmul.f32 %v275, %v276
        %v278 = vadd.f32 %v277, 1e-05
        %v279 = vrsqrt.pop %v278
        %v280 = vmul.f32 %v271, %v279
        %v282 = vlaneseq
        %v283 = vshrl.u32 %v282, 7
        %v284 = vsub.s32 0, %v283
        %v285 = vrot.slane %v272, %v284
        %v287 = vmul.f32 %v280, %v285
        %v288 = vpack.c.bf16 %v287, %v287
        %v289 = vld [vmem:[%s249] sm:$0xf]
        %v290 = vld [vmem:[%s249 + $0x4] sm:$0xf]
        %v291 = vld [vmem:[%s249 + $0x8] sm:$0xf]
        %v292 = vld [vmem:[%s249 + $0xc] sm:$0xf]
        %v293 = vld [vmem:[%s249 + $0x10] sm:$0xf]
        %v294 = vld [vmem:[%s249 + $0x14] sm:$0xf]
        %v295 = vld [vmem:[%s249 + $0x18] sm:$0xf]
        %v296 = vld [vmem:[%s249 + $0x1c] sm:$0xf]
        %v297 = vld [vmem:[%s249 + $0x20] sm:$0xf]
        %v298 = vld [vmem:[%s249 + $0x24] sm:$0xf]
        %v299 = vld [vmem:[%s249 + $0x28] sm:$0xf]
        %v300 = vld [vmem:[%s249 + $0x2c] sm:$0xf]
        %v301 = vld [vmem:[%s249 + $0x30] sm:$0xf]
        %v302 = vld [vmem:[%s249 + $0x34] sm:$0xf]
        %v303 = vld [vmem:[%s249 + $0x38] sm:$0xf]
        %v304 = vld [vmem:[%s249 + $0x3c] sm:$0xf]
        %v321 = vunpack.c.l.b16 %v289
        %v322 = vunpack.c.l.b16 %v290
        %v323 = vunpack.c.l.b16 %v291
        %v324 = vunpack.c.l.b16 %v292
        %v325 = vunpack.c.l.b16 %v293
        %v326 = vunpack.c.l.b16 %v294
        %v327 = vunpack.c.l.b16 %v295
        %v328 = vunpack.c.l.b16 %v296
        %v329 = vunpack.c.l.b16 %v297
        %v330 = vunpack.c.l.b16 %v298
        %v331 = vunpack.c.l.b16 %v299
        %v332 = vunpack.c.l.b16 %v300
        %v333 = vunpack.c.l.b16 %v301
        %v334 = vunpack.c.l.b16 %v302
        %v335 = vunpack.c.l.b16 %v303
        %v336 = vunpack.c.l.b16 %v304
        %v337 = vpack.c.b16 %v322, %v321
        %v338 = vpack.c.b16 %v324, %v323
        %v339 = vpack.c.b16 %v326, %v325
        %v340 = vpack.c.b16 %v328, %v327
        %v341 = vpack.c.b16 %v330, %v329
        %v342 = vpack.c.b16 %v332, %v331
        %v343 = vpack.c.b16 %v334, %v333
        %v344 = vpack.c.b16 %v336, %v335
        %353 = vmatprep.subr.bf16.mxu0 0
        %354 = vmatpush1.bf16.msra.mxu0 %v337
        %355 = vmatprep.subr.bf16.mxu0 0
        %356 = vmatpush1.bf16.msra.mxu0 %v338
        %357 = vmatprep.subr.bf16.mxu0 0
        %358 = vmatpush1.bf16.msra.mxu0 %v339
        %359 = vmatprep.subr.bf16.mxu0 0
        %360 = vmatpush1.bf16.msra.mxu0 %v340
        %361 = vmatprep.subr.bf16.mxu0 0
        %362 = vmatpush1.bf16.msra.mxu0 %v341
        %363 = vmatprep.subr.bf16.mxu0 0
        %364 = vmatpush1.bf16.msra.mxu0 %v342
        %365 = vmatprep.subr.bf16.mxu0 0
        %366 = vmatpush1.bf16.msra.mxu0 %v343
        %367 = vmatprep.subr.bf16.mxu0 0
        %368 = vmatpush1.bf16.msra.mxu0 %v344
        %369 = vmatprep.subr.bf16.mxu0 0
        %370 = vmatpush1.bf16.msra.mxu0 0
        %371 = vmatprep.subr.bf16.mxu0 0
        %372 = vmatpush1.bf16.msra.mxu0 0
        %373 = vmatprep.subr.bf16.mxu0 0
        %374 = vmatpush1.bf16.msra.mxu0 0
        %375 = vmatprep.subr.bf16.mxu0 0
        %376 = vmatpush1.bf16.msra.mxu0 0
        %377 = vmatprep.subr.bf16.mxu0 0
        %378 = vmatpush1.bf16.msra.mxu0 0
        %379 = vmatprep.subr.bf16.mxu0 0
        %380 = vmatpush1.bf16.msra.mxu0 0
        %381 = vmatprep.subr.bf16.mxu0 0
        %382 = vmatpush1.bf16.msra.mxu0 0
        %383 = vmatprep.subr.bf16.mxu0 0
        %384 = vmatpush1.bf16.msra.mxu0 0
        %385 = vmatprep.mubr.bf16.mxu0 0
        %386 = vmatmul.mubr.bf16.gmra.mrb[0].mxu0 %v288
        %v387 = vpop.f32.mrb[0].mxu0
        %v388 = vadd.f32 0.0, %v387
        %v389 = vpop.f32.mrb[0].mxu0
        %v390 = vpop.f32.mrb[0].mxu0
        %v391 = vpop.f32.mrb[0].mxu0
        %392 = vdwg.mxu0
        %393 = vst [vmem:[%s269] sm:$0xff] %v388
        %s394 = sand.u32 %s93, 1
        %s395 = scalar_lea.sflag [#allocation4], %s394
        %s396 = sand.u32 %s93, 1
        %s397 = smul.addr %s396, 8
        %s398 = scalar_lea.vmem [#allocation3], %s397
        // Predicated region
        $region74: #{toy_model_forward.5} parent=68 // pred_check
          %p399 = pneg %p103
        $region75: #{toy_model_forward.5} parent=68 // pred_check_branch
          %401 = sbr.rel (%p399) target = $region77
        $region76: #{toy_model_forward.5} parent=68 // pred_region
          %s403 = ssub.s32 128, 128
          %404 = vsyncadd %s395, %s403
          %s405 = smul.addr %s17, 128
          %s406 = scalar_lea.hbm %s3, %s405
          %s408 = sshll.u32 %s398, 4
          %s409 = int_to_ptr.vmem [resolvable:$true] %s408
          %411 = dma.vmem_to_hbm [thread:$0]  %s409, 128, %s406, %s395
        $region77: #{toy_model_forward.5} parent=68 // pred_fallthru
          _
      $region69: #{toy_model_forward.5} parent=5 // pred_fallthru
        _
      %p412 = scmp.le.s32.totalorder 2, %s12
      // Predicated region
      $region78: #{toy_model_forward.5} parent=5 // pred_check
        %p413 = pneg %p412
      $region79: #{toy_model_forward.5} parent=5 // pred_check_branch
        %415 = sbr.rel (%p413) target = $region81
      $region80: #{toy_model_forward.5} parent=5 // pred_region
        %s416 = ssub.s32 %s12, 2
        // Predicated region
        $region82: #{toy_model_forward.5} parent=80 // pred_check
          %p417 = pneg %p109
        $region83: #{toy_model_forward.5} parent=80 // pred_check_branch
          %419 = sbr.rel (%p417) target = $region85
        $region84: #{toy_model_forward.5} parent=80 // pred_region
          %s420 = sand.u32 %s94, 1
          %s421 = scalar_lea.sflag [#allocation4], %s420
          %s422 = sand.u32 %s94, 1
          %s423 = smul.addr %s422, 8
          %s424 = scalar_lea.vmem [#allocation3], %s423
          %425 = dma.done %s421, 128
        $region85: #{toy_model_forward.5} parent=80 // pred_fallthru
          _
      $region81: #{toy_model_forward.5} parent=5 // pred_fallthru
        _
    $region6: #{toy_model_forward.5} parent=1 // loop_footer
      %s16 = sadd.s32 1, %s12
    $region7: #{toy_model_forward.5} parent=1 // loop_footer_branch
      %11 = sbr.rel target = $region3
    $region8: #{toy_model_forward.5} parent=1 // loop_exit
      _
    %426 = vsyncpa [#allocation4], 1
    %s427 = scalar_lea.sflag [#allocation4], 1
    %428 = vsyncpa %s427, 1

// kernel: toy_model_forward.3
$region0: #{toy_model_forward.3}
  #allocation0 [shape = 'u32[]', space=smem, size = 0x4, offset = 0x4, fixed_abs, tag = 'smem constant byte address 0x4 - core index']
  #allocation1 [shape = 'u32[144,128]{1,0:T(1,128)}', space=vmem, size = 0x12000, scoped, tag = 'internal scratch']
  #allocation2 [shape = 's32[1]{0:T(128)S(6)}', space=smem, size = 0x200, scoped, tag = 'scoped memory for toy_model_forward.3']
  %s0 = inlined_call_operand.<no memory space> [shape: s32[1], index: 0, kind: input, shape index: {}]
  %s1 = inlined_call_operand.vmem [shape: f32[1,8,128], index: 1, kind: input, shape index: {}]
  %s2 = inlined_call_operand.vmem [shape: f32[1,32,128], index: 2, kind: input, shape index: {}, may-alias: {2,13}]
  %s3 = inlined_call_operand.vmem [shape: f32[32,128], index: 3, kind: input, shape index: {}]
  %s4 = inlined_call_operand.vmem [shape: f32[32,128], index: 4, kind: input, shape index: {}]
  %s5 = inlined_call_operand.vmem [shape: f32[32,32], index: 5, kind: input, shape index: {}]
  %s6 = inlined_call_operand.vmem [shape: f32[1,128], index: 6, kind: input, shape index: {}]
  %s7 = inlined_call_operand.vmem [shape: bf16[128,448], index: 7, kind: input, shape index: {}]
  %s8 = inlined_call_operand.vmem [shape: bf16[128,128], index: 8, kind: input, shape index: {}]
  %s9 = inlined_call_operand.vmem [shape: f32[1,128], index: 9, kind: input, shape index: {}]
  %s10 = inlined_call_operand.vmem [shape: bf16[128,512], index: 10, kind: input, shape index: {}]
  %s11 = inlined_call_operand.vmem [shape: bf16[256,128], index: 11, kind: input, shape index: {}]
  %s12 = inlined_call_operand.vmem [shape: f32[1,8,128], index: 12, kind: output, shape index: {0}]
  %s13 = inlined_call_operand.vmem [shape: f32[1,32,128], index: 13, kind: output, shape index: {1}, may-alias: {2,13}]
  %14 = xla_tuple %s12, %s13
  %s15 = sld [smem:[#allocation0]]
  $region66: #{toy_model_forward.3} parent=0
    _
  %s17 = ssub.s32 1, %s15
  %s18 = scalar_select 0, %s17, %s15
  %19 = sst [smem:[#allocation2]] %s0
  // Predicated region
  $region2: #{toy_model_forward.3} parent=0 // pred_check
    _
  $region3: #{toy_model_forward.3} parent=0 // pred_check_branch
    %21 = sbr.rel (0) target = $region5
  $region4: #{toy_model_forward.3} parent=0 // pred_region
    _
  $region5: #{toy_model_forward.3} parent=0 // pred_fallthru
    _
  // Predicated region
  $region6: #{toy_model_forward.3} parent=0 // pred_check
    _
  $region7: #{toy_model_forward.3} parent=0 // pred_check_branch
    %23 = sbr.rel (0) target = $region9
  $region8: #{toy_model_forward.3} parent=0 // pred_region
    _
  $region9: #{toy_model_forward.3} parent=0 // pred_fallthru
    _
  // Predicated region
  $region10: #{toy_model_forward.3} parent=0 // pred_check
    _
  $region11: #{toy_model_forward.3} parent=0 // pred_check_branch
    %25 = sbr.rel (0) target = $region13
  $region12: #{toy_model_forward.3} parent=0 // pred_region
    _
  $region13: #{toy_model_forward.3} parent=0 // pred_fallthru
    _
  // Predicated region
  $region14: #{toy_model_forward.3} parent=0 // pred_check
    _
  $region15: #{toy_model_forward.3} parent=0 // pred_check_branch
    %27 = sbr.rel (0) target = $region17
  $region16: #{toy_model_forward.3} parent=0 // pred_region
    _
  $region17: #{toy_model_forward.3} parent=0 // pred_fallthru
    _
  // Predicated region
  $region18: #{toy_model_forward.3} parent=0 // pred_check
    _
  $region19: #{toy_model_forward.3} parent=0 // pred_check_branch
    %29 = sbr.rel (0) target = $region21
  $region20: #{toy_model_forward.3} parent=0 // pred_region
    _
  $region21: #{toy_model_forward.3} parent=0 // pred_fallthru
    _
  // Predicated region
  $region22: #{toy_model_forward.3} parent=0 // pred_check
    _
  $region23: #{toy_model_forward.3} parent=0 // pred_check_branch
    %31 = sbr.rel (0) target = $region25
  $region24: #{toy_model_forward.3} parent=0 // pred_region
    _
  $region25: #{toy_model_forward.3} parent=0 // pred_fallthru
    _
  // Predicated region
  $region26: #{toy_model_forward.3} parent=0 // pred_check
    _
  $region27: #{toy_model_forward.3} parent=0 // pred_check_branch
    %33 = sbr.rel (0) target = $region29
  $region28: #{toy_model_forward.3} parent=0 // pred_region
    _
  $region29: #{toy_model_forward.3} parent=0 // pred_fallthru
    _
  // Predicated region
  $region30: #{toy_model_forward.3} parent=0 // pred_check
    _
  $region31: #{toy_model_forward.3} parent=0 // pred_check_branch
    %35 = sbr.rel (0) target = $region33
  $region32: #{toy_model_forward.3} parent=0 // pred_region
    _
  $region33: #{toy_model_forward.3} parent=0 // pred_fallthru
    _
  // Predicated region
  $region34: #{toy_model_forward.3} parent=0 // pred_check
    _
  $region35: #{toy_model_forward.3} parent=0 // pred_check_branch
    %37 = sbr.rel (0) target = $region37
  $region36: #{toy_model_forward.3} parent=0 // pred_region
    _
  $region37: #{toy_model_forward.3} parent=0 // pred_fallthru
    _
  // Predicated region
  $region38: #{toy_model_forward.3} parent=0 // pred_check
    _
  $region39: #{toy_model_forward.3} parent=0 // pred_check_branch
    %39 = sbr.rel (0) target = $region41
  $region40: #{toy_model_forward.3} parent=0 // pred_region
    _
  $region41: #{toy_model_forward.3} parent=0 // pred_fallthru
    _
  // Predicated region
  $region42: #{toy_model_forward.3} parent=0 // pred_check
    _
  $region43: #{toy_model_forward.3} parent=0 // pred_check_branch
    %41 = sbr.rel (0) target = $region45
  $region44: #{toy_model_forward.3} parent=0 // pred_region
    _
  $region45: #{toy_model_forward.3} parent=0 // pred_fallthru
    _
  // Predicated region
  $region46: #{toy_model_forward.3} parent=0 // pred_check
    _
  $region47: #{toy_model_forward.3} parent=0 // pred_check_branch
    %43 = sbr.rel (0) target = $region49
  $region48: #{toy_model_forward.3} parent=0 // pred_region
    _
  $region49: #{toy_model_forward.3} parent=0 // pred_fallthru
    _
  %s45 = sld [smem:[#allocation2]]
  %v46 = vld [vmem:[%s1] sm:$0xff]
  %v47 = vld [vmem:[%s6] sm:$0x1]
  %v48 = vmul.f32 %v46, %v46
  %49 = vadd.xlane.f32.xlu0 %v48
  %v50 = vpop.xlane.xlu0 %49
  %v51 = vrcp.pop 128.0
  %v52 = vmul.f32 %v50, %v51
  %v53 = vadd.f32 %v52, 1e-05
  %v54 = vrsqrt.pop %v53
  %v55 = vmul.f32 %v46, %v54
  %v57 = vlaneseq
  %v58 = vshrl.u32 %v57, 7
  %v59 = vsub.s32 0, %v58
  %v60 = vrot.slane %v47, %v59
  %v62 = vmul.f32 %v55, %v60
  %v63 = vpack.c.bf16 %v62, %v62
  %v64 = vld [vmem:[%s7] sm:$0xff]
  %v65 = vld [vmem:[%s7 + $0x8] sm:$0xff]
  %v66 = vld [vmem:[%s7 + $0x10] sm:$0xff]
  %v67 = vld [vmem:[%s7 + $0x18] sm:$0xff]
  %v68 = vld [vmem:[%s7 + $0x20] sm:$0xff]
  %v69 = vld [vmem:[%s7 + $0x28] sm:$0xff]
  %v70 = vld [vmem:[%s7 + $0x30] sm:$0xff]
  %v71 = vld [vmem:[%s7 + $0x38] sm:$0xff]
  %v72 = vld [vmem:[%s7 + $0x40] sm:$0xff]
  %v73 = vld [vmem:[%s7 + $0x48] sm:$0xff]
  %v74 = vld [vmem:[%s7 + $0x50] sm:$0xff]
  %v75 = vld [vmem:[%s7 + $0x58] sm:$0xff]
  %v76 = vld [vmem:[%s7 + $0x60] sm:$0xff]
  %v77 = vld [vmem:[%s7 + $0x68] sm:$0xff]
  %v78 = vld [vmem:[%s7 + $0x70] sm:$0xff]
  %v79 = vld [vmem:[%s7 + $0x78] sm:$0xff]
  %v80 = vld [vmem:[%s7 + $0x80] sm:$0xff]
  %v81 = vld [vmem:[%s7 + $0x88] sm:$0xff]
  %v82 = vld [vmem:[%s7 + $0x90] sm:$0xff]
  %v83 = vld [vmem:[%s7 + $0x98] sm:$0xff]
  %v84 = vld [vmem:[%s7 + $0xa0] sm:$0xff]
  %v85 = vld [vmem:[%s7 + $0xa8] sm:$0xff]
  %v86 = vld [vmem:[%s7 + $0xb0] sm:$0xff]
  %v87 = vld [vmem:[%s7 + $0xb8] sm:$0xff]
  %v88 = vld [vmem:[%s7 + $0xc0] sm:$0xff]
  %v89 = vld [vmem:[%s7 + $0xc8] sm:$0xff]
  %v90 = vld [vmem:[%s7 + $0xd0] sm:$0xff]
  %v91 = vld [vmem:[%s7 + $0xd8] sm:$0xff]
  %v92 = vld [vmem:[%s7 + $0xe0] sm:$0xff]
  %v93 = vld [vmem:[%s7 + $0xe8] sm:$0xff]
  %v94 = vld [vmem:[%s7 + $0xf0] sm:$0xff]
  %v95 = vld [vmem:[%s7 + $0xf8] sm:$0xff]
  %v128 = vunpack.c.l.b16 %v64
  %v129 = vunpack.c.h.b16 %v64
  %v130 = vunpack.c.l.b16 %v65
  %v131 = vunpack.c.h.b16 %v65
  %v132 = vunpack.c.l.b16 %v66
  %v133 = vunpack.c.h.b16 %v66
  %v134 = vunpack.c.l.b16 %v67
  %v135 = vunpack.c.h.b16 %v67
  %v136 = vunpack.c.l.b16 %v68
  %v137 = vunpack.c.h.b16 %v68
  %v138 = vunpack.c.l.b16 %v69
  %v139 = vunpack.c.h.b16 %v69
  %v140 = vunpack.c.l.b16 %v70
  %v141 = vunpack.c.h.b16 %v70
  %v142 = vunpack.c.l.b16 %v71
  %v143 = vunpack.c.h.b16 %v71
  %v144 = vunpack.c.l.b16 %v72
  %v145 = vunpack.c.h.b16 %v72
  %v146 = vunpack.c.l.b16 %v73
  %v147 = vunpack.c.h.b16 %v73
  %v148 = vunpack.c.l.b16 %v74
  %v149 = vunpack.c.h.b16 %v74
  %v150 = vunpack.c.l.b16 %v75
  %v151 = vunpack.c.h.b16 %v75
  %v152 = vunpack.c.l.b16 %v76
  %v153 = vunpack.c.h.b16 %v76
  %v154 = vunpack.c.l.b16 %v77
  %v155 = vunpack.c.h.b16 %v77
  %v156 = vunpack.c.l.b16 %v78
  %v157 = vunpack.c.h.b16 %v78
  %v158 = vunpack.c.l.b16 %v79
  %v159 = vunpack.c.h.b16 %v79
  %v160 = vunpack.c.l.b16 %v80
  %v161 = vunpack.c.h.b16 %v80
  %v162 = vunpack.c.l.b16 %v81
  %v163 = vunpack.c.h.b16 %v81
  %v164 = vunpack.c.l.b16 %v82
  %v165 = vunpack.c.h.b16 %v82
  %v166 = vunpack.c.l.b16 %v83
  %v167 = vunpack.c.h.b16 %v83
  %v168 = vunpack.c.l.b16 %v84
  %v169 = vunpack.c.h.b16 %v84
  %v170 = vunpack.c.l.b16 %v85
  %v171 = vunpack.c.h.b16 %v85
  %v172 = vunpack.c.l.b16 %v86
  %v173 = vunpack.c.h.b16 %v86
  %v174 = vunpack.c.l.b16 %v87
  %v175 = vunpack.c.h.b16 %v87
  %v176 = vunpack.c.l.b16 %v88
  %v177 = vunpack.c.h.b16 %v88
  %v178 = vunpack.c.l.b16 %v89
  %v179 = vunpack.c.h.b16 %v89
  %v180 = vunpack.c.l.b16 %v90
  %v181 = vunpack.c.h.b16 %v90
  %v182 = vunpack.c.l.b16 %v91
  %v183 = vunpack.c.h.b16 %v91
  %v184 = vunpack.c.l.b16 %v92
  %v185 = vunpack.c.h.b16 %v92
  %v186 = vunpack.c.l.b16 %v93
  %v187 = vunpack.c.h.b16 %v93
  %v188 = vunpack.c.l.b16 %v94
  %v189 = vunpack.c.h.b16 %v94
  %v190 = vunpack.c.l.b16 %v95
  %v191 = vunpack.c.h.b16 %v95
  %v192 = vpack.c.b16 %v132, %v128
  %v193 = vpack.c.b16 %v133, %v129
  %v194 = vpack.c.b16 %v134, %v130
  %v195 = vpack.c.b16 %v135, %v131
  %v196 = vpack.c.b16 %v140, %v136
  %v197 = vpack.c.b16 %v141, %v137
  %v198 = vpack.c.b16 %v142, %v138
  %v199 = vpack.c.b16 %v143, %v139
  %v200 = vpack.c.b16 %v148, %v144
  %v201 = vpack.c.b16 %v149, %v145
  %v202 = vpack.c.b16 %v150, %v146
  %v203 = vpack.c.b16 %v151, %v147
  %v204 = vpack.c.b16 %v156, %v152
  %v205 = vpack.c.b16 %v157, %v153
  %v206 = vpack.c.b16 %v158, %v154
  %v207 = vpack.c.b16 %v159, %v155
  %v208 = vpack.c.b16 %v164, %v160
  %v209 = vpack.c.b16 %v165, %v161
  %v210 = vpack.c.b16 %v166, %v162
  %v211 = vpack.c.b16 %v167, %v163
  %v212 = vpack.c.b16 %v172, %v168
  %v213 = vpack.c.b16 %v173, %v169
  %v214 = vpack.c.b16 %v174, %v170
  %v215 = vpack.c.b16 %v175, %v171
  %v216 = vpack.c.b16 %v180, %v176
  %v217 = vpack.c.b16 %v181, %v177
  %v218 = vpack.c.b16 %v182, %v178
  %v219 = vpack.c.b16 %v183, %v179
  %v220 = vpack.c.b16 %v188, %v184
  %v221 = vpack.c.b16 %v189, %v185
  %v222 = vpack.c.b16 %v190, %v186
  %v223 = vpack.c.b16 %v191, %v187
  %256 = vmatprep.subr.bf16.mxu0 %v193
  %257 = vmatpush1.bf16.msra.mxu0 %v192
  %258 = vmatprep.subr.bf16.mxu0 %v197
  %259 = vmatpush1.bf16.msra.mxu0 %v196
  %260 = vmatprep.subr.bf16.mxu0 %v201
  %261 = vmatpush1.bf16.msra.mxu0 %v200
  %262 = vmatprep.subr.bf16.mxu0 %v205
  %263 = vmatpush1.bf16.msra.mxu0 %v204
  %264 = vmatprep.subr.bf16.mxu0 %v209
  %265 = vmatpush1.bf16.msra.mxu0 %v208
  %266 = vmatprep.subr.bf16.mxu0 %v213
  %267 = vmatpush1.bf16.msra.mxu0 %v212
  %268 = vmatprep.subr.bf16.mxu0 %v217
  %269 = vmatpush1.bf16.msra.mxu0 %v216
  %270 = vmatprep.subr.bf16.mxu0 %v221
  %271 = vmatpush1.bf16.msra.mxu0 %v220
  %272 = vmatprep.subr.bf16.mxu0 0
  %273 = vmatpush1.bf16.msra.mxu0 0
  %274 = vmatprep.subr.bf16.mxu0 0
  %275 = vmatpush1.bf16.msra.mxu0 0
  %276 = vmatprep.subr.bf16.mxu0 0
  %277 = vmatpush1.bf16.msra.mxu0 0
  %278 = vmatprep.subr.bf16.mxu0 0
  %279 = vmatpush1.bf16.msra.mxu0 0
  %280 = vmatprep.subr.bf16.mxu0 0
  %281 = vmatpush1.bf16.msra.mxu0 0
  %282 = vmatprep.subr.bf16.mxu0 0
  %283 = vmatpush1.bf16.msra.mxu0 0
  %284 = vmatprep.subr.bf16.mxu0 0
  %285 = vmatpush1.bf16.msra.mxu0 0
  %286 = vmatprep.subr.bf16.mxu0 0
  %287 = vmatpush1.bf16.msra.mxu0 0
  %288 = vmatprep.mubr.bf16.mxu0 0
  %289 = vmatmul.mubr.bf16.gmra.mrb[0].mxu0 %v63
  %v290 = vpop.f32.mrb[0].mxu0
  %v291 = vadd.f32 0.0, %v290
  %v292 = vpop.f32.mrb[0].mxu0
  %v293 = vadd.f32 0.0, %v292
  %v294 = vpop.f32.mrb[0].mxu0
  %v295 = vpop.f32.mrb[0].mxu0
  %296 = vdwg.mxu0
  %297 = vmatprep.subr.bf16.mxu0 %v195
  %298 = vmatpush1.bf16.msra.mxu0 %v194
  %299 = vmatprep.subr.bf16.mxu0 %v199
  %300 = vmatpush1.bf16.msra.mxu0 %v198
  %301 = vmatprep.subr.bf16.mxu0 %v203
  %302 = vmatpush1.bf16.msra.mxu0 %v202
  %303 = vmatprep.subr.bf16.mxu0 %v207
  %304 = vmatpush1.bf16.msra.mxu0 %v206
  %305 = vmatprep.subr.bf16.mxu0 %v211
  %306 = vmatpush1.bf16.msra.mxu0 %v210
  %307 = vmatprep.subr.bf16.mxu0 %v215
  %308 = vmatpush1.bf16.msra.mxu0 %v214
  %309 = vmatprep.subr.bf16.mxu0 %v219
  %310 = vmatpush1.bf16.msra.mxu0 %v218
  %311 = vmatprep.subr.bf16.mxu0 %v223
  %312 = vmatpush1.bf16.msra.mxu0 %v222
  %313 = vmatprep.subr.bf16.mxu0 0
  %314 = vmatpush1.bf16.msra.mxu0 0
  %315 = vmatprep.subr.bf16.mxu0 0
  %316 = vmatpush1.bf16.msra.mxu0 0
  %317 = vmatprep.subr.bf16.mxu0 0
  %318 = vmatpush1.bf16.msra.mxu0 0
  %319 = vmatprep.subr.bf16.mxu0 0
  %320 = vmatpush1.bf16.msra.mxu0 0
  %321 = vmatprep.subr.bf16.mxu0 0
  %322 = vmatpush1.bf16.msra.mxu0 0
  %323 = vmatprep.subr.bf16.mxu0 0
  %324 = vmatpush1.bf16.msra.mxu0 0
  %325 = vmatprep.subr.bf16.mxu0 0
  %326 = vmatpush1.bf16.msra.mxu0 0
  %327 = vmatprep.subr.bf16.mxu0 0
  %328 = vmatpush1.bf16.msra.mxu0 0
  %329 = vmatprep.mubr.bf16.mxu0 0
  %330 = vmatmul.mubr.bf16.gmra.mrb[0].mxu0 %v63
  %v331 = vpop.f32.mrb[0].mxu0
  %v332 = vadd.f32 0.0, %v331
  %v333 = vpop.f32.mrb[0].mxu0
  %v334 = vadd.f32 0.0, %v333
  %v335 = vpop.f32.mrb[0].mxu0
  %v336 = vpop.f32.mrb[0].mxu0
  %337 = vdwg.mxu0
  %s338 = scalar_lea.vmem %s3, %s45
  %v339 = vld [vmem:[%s338] sm:$0xff]
  %s340 = scalar_lea.vmem %s4, %s45
  %v341 = vld [vmem:[%s340] sm:$0xff]
  %v342 = vmul.f32 %v291, %v339
  %v343 = vmul.f32 %v332, %v341
  %v344 = vadd.f32 %v342, %v343
  %v345 = vmul.f32 %v293, %v339
  %v346 = vmul.f32 %v334, %v341
  %v347 = vadd.f32 %v345, %v346
  %v348 = vld [vmem:[%s2] sm:$0xff]
  %v349 = vld [vmem:[%s2 + $0x8] sm:$0xff]
  %v350 = vld [vmem:[%s2 + $0x10] sm:$0xff]
  %v351 = vld [vmem:[%s2 + $0x18] sm:$0xff]
  %352 = vst [vmem:[%s13] sm:$0xff] %v348
  %353 = vst [vmem:[%s13 + $0x8] sm:$0xff] %v349
  %354 = vst [vmem:[%s13 + $0x10] sm:$0xff] %v350
  %355 = vst [vmem:[%s13 + $0x18] sm:$0xff] %v351
  %vm356 = vcmask 523264
  %v357 = vsel %vm356, %v347, %v293
  %s358 = scalar_lea.vmem %s13, %s45
  %359 = vst [vmem:[%s358] sm:$0xff] %v357
  %v360 = vld [vmem:[%s13] sm:$0xff]
  %v361 = vld [vmem:[%s13 + $0x8] sm:$0xff]
  %v362 = vld [vmem:[%s13 + $0x10] sm:$0xff]
  %v363 = vld [vmem:[%s13 + $0x18] sm:$0xff]
  %s364 = scalar_lea.vmem %s5, %s45
  %v365 = vld [vmem:[%s364] sm:$0xff]
  %367 = vrot.lane.b32.xlu0 %v344, 112
  %v368 = vpop.permute.xlu0 %367
  %vm369 = vcmask 130048
  %v370 = vsel %vm369, %v344, 0
  %v372 = vsel %vm369, %v368, 0
  %v375 = vsel %vm369, %v360, 0
  %v378 = vsel %vm369, %v361, 0
  %v381 = vsel %vm369, %v362, 0
  %v384 = vsel %vm369, %v363, 0
  %386 = vmatprep.subr.mxu0 0.0
  %387 = vmatpush1.xpose.msra.mxu0 %v375
  %388 = vmatprep.subr.mxu0 0.0
  %389 = vmatpush1.xpose.msra.mxu0 %v378
  %390 = vmatprep.subr.mxu0 0.0
  %391 = vmatpush1.xpose.msra.mxu0 %v381
  %392 = vmatprep.subr.mxu0 0.0
  %393 = vmatpush1.xpose.msra.mxu0 %v384
  %394 = vmatprep.subr.mxu0 0.0
  %395 = vmatpush1.xpose.msra.mxu0 0.0
  %396 = vmatprep.subr.mxu0 0.0
  %397 = vmatpush1.xpose.msra.mxu0 0.0
  %398 = vmatprep.subr.mxu0 0.0
  %399 = vmatpush1.xpose.msra.mxu0 0.0
  %400 = vmatprep.subr.mxu0 0.0
  %401 = vmatpush1.xpose.msra.mxu0 0.0
  %402 = vmatprep.subr.mxu0 0.0
  %403 = vmatpush1.xpose.msra.mxu0 0.0
  %404 = vmatprep.subr.mxu0 0.0
  %405 = vmatpush1.xpose.msra.mxu0 0.0
  %406 = vmatprep.subr.mxu0 0.0
  %407 = vmatpush1.xpose.msra.mxu0 0.0
  %408 = vmatprep.subr.mxu0 0.0
  %409 = vmatpush1.xpose.msra.mxu0 0.0
  %410 = vmatprep.subr.mxu0 0.0
  %411 = vmatpush1.xpose.msra.mxu0 0.0
  %412 = vmatprep.subr.mxu0 0.0
  %413 = vmatpush1.xpose.msra.mxu0 0.0
  %414 = vmatprep.subr.mxu0 0.0
  %415 = vmatpush1.xpose.msra.mxu0 0.0
  %416 = vmatprep.subr.mxu0 0.0
  %417 = vmatpush1.xpose.msra.mxu0 0.0
  %418 = vmatprep.subr.mxu0 0.0
  %419 = vmatpush1.xpose.msra.mxu0 0.0
  %420 = vmatprep.subr.mxu0 0.0
  %421 = vmatpush1.xpose.msra.mxu0 0.0
  %422 = vmatprep.subr.mxu0 0.0
  %423 = vmatpush1.xpose.msra.mxu0 0.0
  %424 = vmatprep.subr.mxu0 0.0
  %425 = vmatpush1.xpose.msra.mxu0 0.0
  %426 = vmatprep.subr.mxu0 0.0
  %427 = vmatpush1.xpose.msra.mxu0 0.0
  %428 = vmatprep.subr.mxu0 0.0
  %429 = vmatpush1.xpose.msra.mxu0 0.0
  %430 = vmatprep.subr.mxu0 0.0
  %431 = vmatpush1.xpose.msra.mxu0 0.0
  %432 = vmatprep.subr.mxu0 0.0
  %433 = vmatpush1.xpose.msra.mxu0 0.0
  %434 = vmatprep.subr.mxu0 0.0
  %435 = vmatpush1.xpose.msra.mxu0 0.0
  %436 = vmatprep.subr.mxu0 0.0
  %437 = vmatpush1.xpose.msra.mxu0 0.0
  %438 = vmatprep.subr.mxu0 0.0
  %439 = vmatpush1.xpose.msra.mxu0 0.0
  %440 = vmatprep.subr.mxu0 0.0
  %441 = vmatpush1.xpose.msra.mxu0 0.0
  %442 = vmatprep.subr.mxu0 0.0
  %443 = vmatpush1.xpose.msra.mxu0 0.0
  %444 = vmatprep.subr.mxu0 0.0
  %445 = vmatpush1.xpose.msra.mxu0 0.0
  %446 = vmatprep.subr.mxu0 0.0
  %447 = vmatpush1.xpose.msra.mxu0 0.0
  %448 = vmatprep.subr.mxu0 0.0
  %449 = vmatpush1.xpose.msra.mxu0 0.0
  %450 = vmatprep.mubr.f32.mxu0 0.0
  %451 = vmatmul.mubr.f32.gmra.mrb[0].mxu0 %v370
  %v452 = vpop.f32.mrb[0].mxu0
  %v453 = vadd.f32 0.0, %v452
  %v454 = vpop.f32.mrb[0].mxu0
  %455 = vmatprep.mubr.f32.mxu0 0.0
  %456 = vmatmul.mubr.f32.gmra.mrb[0].mxu0 %v372
  %v457 = vpop.f32.mrb[0].mxu0
  %v458 = vadd.f32 0.0, %v457
  %v459 = vpop.f32.mrb[0].mxu0
  %460 = vdwg.mxu0
  %v461 = vmul.f32 %v453, 0.25
  %v462 = vmul.f32 %v458, 0.25
  %v463 = vadd.f32 %v461, %v365
  %v464 = vadd.f32 %v462, %v365
  %vm465 = vcmask 261120
  %v466 = vsel %vm465, %v463, -inf
  %467 = vmax.xlane.f32.xlu0 %v466
  %v468 = vpop.xlane.xlu0 %467
  %v469 = vsel %vm465, %v464, -inf
  %470 = vmax.xlane.f32.xlu0 %v469
  %v471 = vpop.xlane.xlu0 %470
  %v472 = vsub.f32 %v463, %v468
  %v473 = vsub.f32 %v464, %v471
  %v474 = vmul.f32 %v472, 1.442695
  %v475 = vpow.pop %v474
  %v476 = vmul.f32 %v473, 1.442695
  %v477 = vpow.pop %v476
  %v478 = vsel %vm465, %v475, 0.0
  %479 = vadd.xlane.f32.xlu0 %v478
  %v480 = vpop.xlane.xlu0 %479
  %v481 = vsel %vm465, %v477, 0.0
  %482 = vadd.xlane.f32.xlu0 %v481
  %v483 = vpop.xlane.xlu0 %482
  %v484 = vrcp.pop %v480
  %v485 = vrcp.pop %v483
  %v486 = vmul.f32 %v475, %v484
  %v487 = vmul.f32 %v477, %v485
  %488 = vrot.lane.b32.xlu0 %v360, 64
  %v489 = vpop.permute.xlu0 %488
  %490 = vrot.lane.b32.xlu0 %v361, 64
  %v491 = vpop.permute.xlu0 %490
  %492 = vrot.lane.b32.xlu0 %v362, 64
  %v493 = vpop.permute.xlu0 %492
  %494 = vrot.lane.b32.xlu0 %v363, 64
  %v495 = vpop.permute.xlu0 %494
  %v501 = vsel %vm465, %v486, 0
  %v504 = vsel %vm465, %v487, 0
  %506 = vmatprep.subr.mxu0 0.0
  %507 = vmatpush1.msra.mxu0 %v489
  %508 = vmatprep.subr.mxu0 0.0
  %509 = vmatpush1.msra.mxu0 %v491
  %510 = vmatprep.subr.mxu0 0.0
  %511 = vmatpush1.msra.mxu0 %v493
  %512 = vmatprep.subr.mxu0 0.0
  %513 = vmatpush1.msra.mxu0 %v495
  %514 = vmatprep.subr.mxu0 0.0
  %515 = vmatpush1.msra.mxu0 0.0
  %516 = vmatprep.subr.mxu0 0.0
  %517 = vmatpush1.msra.mxu0 0.0
  %518 = vmatprep.subr.mxu0 0.0
  %519 = vmatpush1.msra.mxu0 0.0
  %520 = vmatprep.subr.mxu0 0.0
  %521 = vmatpush1.msra.mxu0 0.0
  %522 = vmatprep.subr.mxu0 0.0
  %523 = vmatpush1.msra.mxu0 0.0
  %524 = vmatprep.subr.mxu0 0.0
  %525 = vmatpush1.msra.mxu0 0.0
  %526 = vmatprep.subr.mxu0 0.0
  %527 = vmatpush1.msra.mxu0 0.0
  %528 = vmatprep.subr.mxu0 0.0
  %529 = vmatpush1.msra.mxu0 0.0
  %530 = vmatprep.subr.mxu0 0.0
  %531 = vmatpush1.msra.mxu0 0.0
  %532 = vmatprep.subr.mxu0 0.0
  %533 = vmatpush1.msra.mxu0 0.0
  %534 = vmatprep.subr.mxu0 0.0
  %535 = vmatpush1.msra.mxu0 0.0
  %536 = vmatprep.subr.mxu0 0.0
  %537 = vmatpush1.msra.mxu0 0.0
  %538 = vmatprep.subr.mxu0 0.0
  %539 = vmatpush1.msra.mxu0 0.0
  %540 = vmatprep.subr.mxu0 0.0
  %541 = vmatpush1.msra.mxu0 0.0
  %542 = vmatprep.subr.mxu0 0.0
  %543 = vmatpush1.msra.mxu0 0.0
  %544 = vmatprep.subr.mxu0 0.0
  %545 = vmatpush1.msra.mxu0 0.0
  %546 = vmatprep.subr.mxu0 0.0
  %547 = vmatpush1.msra.mxu0 0.0
  %548 = vmatprep.subr.mxu0 0.0
  %549 = vmatpush1.msra.mxu0 0.0
  %550 = vmatprep.subr.mxu0 0.0
  %551 = vmatpush1.msra.mxu0 0.0
  %552 = vmatprep.subr.mxu0 0.0
  %553 = vmatpush1.msra.mxu0 0.0
  %554 = vmatprep.subr.mxu0 0.0
  %555 = vmatpush1.msra.mxu0 0.0
  %556 = vmatprep.subr.mxu0 0.0
  %557 = vmatpush1.msra.mxu0 0.0
  %558 = vmatprep.subr.mxu0 0.0
  %559 = vmatpush1.msra.mxu0 0.0
  %560 = vmatprep.subr.mxu0 0.0
  %561 = vmatpush1.msra.mxu0 0.0
  %562 = vmatprep.subr.mxu0 0.0
  %563 = vmatpush1.msra.mxu0 0.0
  %564 = vmatprep.subr.mxu0 0.0
  %565 = vmatpush1.msra.mxu0 0.0
  %566 = vmatprep.subr.mxu0 0.0
  %567 = vmatpush1.msra.mxu0 0.0
  %568 = vmatprep.subr.mxu0 0.0
  %569 = vmatpush1.msra.mxu0 0.0
  %570 = vmatprep.mubr.f32.mxu0 0.0
  %571 = vmatmul.mubr.f32.gmra.mrb[0].mxu0 %v501
  %v572 = vpop.f32.mrb[0].mxu0
  %v573 = vadd.f32 0.0, %v572
  %v574 = vpop.f32.mrb[0].mxu0
  %575 = vmatprep.mubr.f32.mxu0 0.0
  %576 = vmatmul.mubr.f32.gmra.mrb[0].mxu0 %v504
  %v577 = vpop.f32.mrb[0].mxu0
  %v578 = vadd.f32 0.0, %v577
  %v579 = vpop.f32.mrb[0].mxu0
  %580 = vdwg.mxu0
  %582 = vrot.lane.b32.xlu0 %v578, 16
  %v583 = vpop.permute.xlu0 %582
  %v585 = vsel %vm369, %v573, %v583
  %v586 = vpack.c.bf16 %v585, %v585
  %v587 = vld [vmem:[%s8] sm:$0xf]
  %v588 = vld [vmem:[%s8 + $0x4] sm:$0xf]
  %v589 = vld [vmem:[%s8 + $0x8] sm:$0xf]
  %v590 = vld [vmem:[%s8 + $0xc] sm:$0xf]
  %591 = vrot.lane.b32.xlu0 %v344, 96
  %v592 = vpop.permute.xlu0 %591
  %593 = vrot.lane.b32.xlu0 %v368, 96
  %v594 = vpop.permute.xlu0 %593
  %595 = vrot.lane.b32.xlu0 %v360, 112
  %v596 = vpop.permute.xlu0 %595
  %597 = vrot.lane.b32.xlu0 %v361, 112
  %v598 = vpop.permute.xlu0 %597
  %599 = vrot.lane.b32.xlu0 %v362, 112
  %v600 = vpop.permute.xlu0 %599
  %601 = vrot.lane.b32.xlu0 %v363, 112
  %v602 = vpop.permute.xlu0 %601
  %v603 = vsel %vm369, %v592, 0
  %v605 = vsel %vm369, %v594, 0
  %v607 = vsel %vm369, %v596, 0
  %v609 = vsel %vm369, %v598, 0
  %v611 = vsel %vm369, %v600, 0
  %v613 = vsel %vm369, %v602, 0
  %615 = vmatprep.subr.mxu0 0.0
  %616 = vmatpush1.xpose.msra.mxu0 %v607
  %617 = vmatprep.subr.mxu0 0.0
  %618 = vmatpush1.xpose.msra.mxu0 %v609
  %619 = vmatprep.subr.mxu0 0.0
  %620 = vmatpush1.xpose.msra.mxu0 %v611
  %621 = vmatprep.subr.mxu0 0.0
  %622 = vmatpush1.xpose.msra.mxu0 %v613
  %623 = vmatprep.subr.mxu0 0.0
  %624 = vmatpush1.xpose.msra.mxu0 0.0
  %625 = vmatprep.subr.mxu0 0.0
  %626 = vmatpush1.xpose.msra.mxu0 0.0
  %627 = vmatprep.subr.mxu0 0.0
  %628 = vmatpush1.xpose.msra.mxu0 0.0
  %629 = vmatprep.subr.mxu0 0.0
  %630 = vmatpush1.xpose.msra.mxu0 0.0
  %631 = vmatprep.subr.mxu0 0.0
  %632 = vmatpush1.xpose.msra.mxu0 0.0
  %633 = vmatprep.subr.mxu0 0.0
  %634 = vmatpush1.xpose.msra.mxu0 0.0
  %635 = vmatprep.subr.mxu0 0.0
  %636 = vmatpush1.xpose.msra.mxu0 0.0
  %637 = vmatprep.subr.mxu0 0.0
  %638 = vmatpush1.xpose.msra.mxu0 0.0
  %639 = vmatprep.subr.mxu0 0.0
  %640 = vmatpush1.xpose.msra.mxu0 0.0
  %641 = vmatprep.subr.mxu0 0.0
  %642 = vmatpush1.xpose.msra.mxu0 0.0
  %643 = vmatprep.subr.mxu0 0.0
  %644 = vmatpush1.xpose.msra.mxu0 0.0
  %645 = vmatprep.subr.mxu0 0.0
  %646 = vmatpush1.xpose.msra.mxu0 0.0
  %647 = vmatprep.subr.mxu0 0.0
  %648 = vmatpush1.xpose.msra.mxu0 0.0
  %649 = vmatprep.subr.mxu0 0.0
  %650 = vmatpush1.xpose.msra.mxu0 0.0
  %651 = vmatprep.subr.mxu0 0.0
  %652 = vmatpush1.xpose.msra.mxu0 0.0
  %653 = vmatprep.subr.mxu0 0.0
  %654 = vmatpush1.xpose.msra.mxu0 0.0
  %655 = vmatprep.subr.mxu0 0.0
  %656 = vmatpush1.xpose.msra.mxu0 0.0
  %657 = vmatprep.subr.mxu0 0.0
  %658 = vmatpush1.xpose.msra.mxu0 0.0
  %659 = vmatprep.subr.mxu0 0.0
  %660 = vmatpush1.xpose.msra.mxu0 0.0
  %661 = vmatprep.subr.mxu0 0.0
  %662 = vmatpush1.xpose.msra.mxu0 0.0
  %663 = vmatprep.subr.mxu0 0.0
  %664 = vmatpush1.xpose.msra.mxu0 0.0
  %665 = vmatprep.subr.mxu0 0.0
  %666 = vmatpush1.xpose.msra.mxu0 0.0
  %667 = vmatprep.subr.mxu0 0.0
  %668 = vmatpush1.xpose.msra.mxu0 0.0
  %669 = vmatprep.subr.mxu0 0.0
  %670 = vmatpush1.xpose.msra.mxu0 0.0
  %671 = vmatprep.subr.mxu0 0.0
  %672 = vmatpush1.xpose.msra.mxu0 0.0
  %673 = vmatprep.subr.mxu0 0.0
  %674 = vmatpush1.xpose.msra.mxu0 0.0
  %675 = vmatprep.subr.mxu0 0.0
  %676 = vmatpush1.xpose.msra.mxu0 0.0
  %677 = vmatprep.subr.mxu0 0.0
  %678 = vmatpush1.xpose.msra.mxu0 0.0
  %679 = vmatprep.mubr.f32.mxu0 0.0
  %680 = vmatmul.mubr.f32.gmra.mrb[0].mxu0 %v603
  %v681 = vpop.f32.mrb[0].mxu0
  %v682 = vadd.f32 0.0, %v681
  %v683 = vpop.f32.mrb[0].mxu0
  %684 = vmatprep.mubr.f32.mxu0 0.0
  %685 = vmatmul.mubr.f32.gmra.mrb[0].mxu0 %v605
  %v686 = vpop.f32.mrb[0].mxu0
  %v687 = vadd.f32 0.0, %v686
  %v688 = vpop.f32.mrb[0].mxu0
  %689 = vdwg.mxu0
  %v690 = vmul.f32 %v682, 0.25
  %v691 = vmul.f32 %v687, 0.25
  %v692 = vadd.f32 %v690, %v365
  %v693 = vadd.f32 %v691, %v365
  %v694 = vsel %vm465, %v692, -inf
  %695 = vmax.xlane.f32.xlu0 %v694
  %v696 = vpop.xlane.xlu0 %695
  %v697 = vsel %vm465, %v693, -inf
  %698 = vmax.xlane.f32.xlu0 %v697
  %v699 = vpop.xlane.xlu0 %698
  %v700 = vsub.f32 %v692, %v696
  %v701 = vsub.f32 %v693, %v699
  %v702 = vmul.f32 %v700, 1.442695
  %v703 = vpow.pop %v702
  %v704 = vmul.f32 %v701, 1.442695
  %v705 = vpow.pop %v704
  %v706 = vsel %vm465, %v703, 0.0
  %707 = vadd.xlane.f32.xlu0 %v706
  %v708 = vpop.xlane.xlu0 %707
  %v709 = vsel %vm465, %v705, 0.0
  %710 = vadd.xlane.f32.xlu0 %v709
  %v711 = vpop.xlane.xlu0 %710
  %v712 = vrcp.pop %v708
  %v713 = vrcp.pop %v711
  %v714 = vmul.f32 %v703, %v712
  %v715 = vmul.f32 %v705, %v713
  %716 = vrot.lane.b32.xlu0 %v360, 48
  %v717 = vpop.permute.xlu0 %716
  %718 = vrot.lane.b32.xlu0 %v361, 48
  %v719 = vpop.permute.xlu0 %718
  %720 = vrot.lane.b32.xlu0 %v362, 48
  %v721 = vpop.permute.xlu0 %720
  %722 = vrot.lane.b32.xlu0 %v363, 48
  %v723 = vpop.permute.xlu0 %722
  %v729 = vsel %vm465, %v714, 0
  %v732 = vsel %vm465, %v715, 0
  %734 = vmatprep.subr.mxu0 0.0
  %735 = vmatpush1.msra.mxu0 %v717
  %736 = vmatprep.subr.mxu0 0.0
  %737 = vmatpush1.msra.mxu0 %v719
  %738 = vmatprep.subr.mxu0 0.0
  %739 = vmatpush1.msra.mxu0 %v721
  %740 = vmatprep.subr.mxu0 0.0
  %741 = vmatpush1.msra.mxu0 %v723
  %742 = vmatprep.subr.mxu0 0.0
  %743 = vmatpush1.msra.mxu0 0.0
  %744 = vmatprep.subr.mxu0 0.0
  %745 = vmatpush1.msra.mxu0 0.0
  %746 = vmatprep.subr.mxu0 0.0
  %747 = vmatpush1.msra.mxu0 0.0
  %748 = vmatprep.subr.mxu0 0.0
  %749 = vmatpush1.msra.mxu0 0.0
  %750 = vmatprep.subr.mxu0 0.0
  %751 = vmatpush1.msra.mxu0 0.0
  %752 = vmatprep.subr.mxu0 0.0
  %753 = vmatpush1.msra.mxu0 0.0
  %754 = vmatprep.subr.mxu0 0.0
  %755 = vmatpush1.msra.mxu0 0.0
  %756 = vmatprep.subr.mxu0 0.0
  %757 = vmatpush1.msra.mxu0 0.0
  %758 = vmatprep.subr.mxu0 0.0
  %759 = vmatpush1.msra.mxu0 0.0
  %760 = vmatprep.subr.mxu0 0.0
  %761 = vmatpush1.msra.mxu0 0.0
  %762 = vmatprep.subr.mxu0 0.0
  %763 = vmatpush1.msra.mxu0 0.0
  %764 = vmatprep.subr.mxu0 0.0
  %765 = vmatpush1.msra.mxu0 0.0
  %766 = vmatprep.subr.mxu0 0.0
  %767 = vmatpush1.msra.mxu0 0.0
  %768 = vmatprep.subr.mxu0 0.0
  %769 = vmatpush1.msra.mxu0 0.0
  %770 = vmatprep.subr.mxu0 0.0
  %771 = vmatpush1.msra.mxu0 0.0
  %772 = vmatprep.subr.mxu0 0.0
  %773 = vmatpush1.msra.mxu0 0.0
  %774 = vmatprep.subr.mxu0 0.0
  %775 = vmatpush1.msra.mxu0 0.0
  %776 = vmatprep.subr.mxu0 0.0
  %777 = vmatpush1.msra.mxu0 0.0
  %778 = vmatprep.subr.mxu0 0.0
  %779 = vmatpush1.msra.mxu0 0.0
  %780 = vmatprep.subr.mxu0 0.0
  %781 = vmatpush1.msra.mxu0 0.0
  %782 = vmatprep.subr.mxu0 0.0
  %783 = vmatpush1.msra.mxu0 0.0
  %784 = vmatprep.subr.mxu0 0.0
  %785 = vmatpush1.msra.mxu0 0.0
  %786 = vmatprep.subr.mxu0 0.0
  %787 = vmatpush1.msra.mxu0 0.0
  %788 = vmatprep.subr.mxu0 0.0
  %789 = vmatpush1.msra.mxu0 0.0
  %790 = vmatprep.subr.mxu0 0.0
  %791 = vmatpush1.msra.mxu0 0.0
  %792 = vmatprep.subr.mxu0 0.0
  %793 = vmatpush1.msra.mxu0 0.0
  %794 = vmatprep.subr.mxu0 0.0
  %795 = vmatpush1.msra.mxu0 0.0
  %796 = vmatprep.subr.mxu0 0.0
  %797 = vmatpush1.msra.mxu0 0.0
  %798 = vmatprep.mubr.f32.mxu0 0.0
  %799 = vmatmul.mubr.f32.gmra.mrb[0].mxu0 %v729
  %v800 = vpop.f32.mrb[0].mxu0
  %v801 = vadd.f32 0.0, %v800
  %v802 = vpop.f32.mrb[0].mxu0
  %803 = vmatprep.mubr.f32.mxu0 0.0
  %804 = vmatmul.mubr.f32.gmra.mrb[0].mxu0 %v732
  %v805 = vpop.f32.mrb[0].mxu0
  %v806 = vadd.f32 0.0, %v805
  %v807 = vpop.f32.mrb[0].mxu0
  %808 = vdwg.mxu0
  %810 = vrot.lane.b32.xlu0 %v806, 16
  %v811 = vpop.permute.xlu0 %810
  %v813 = vsel %vm369, %v801, %v811
  %v814 = vpack.c.bf16 %v813, %v813
  %v815 = vld [vmem:[%s8 + $0x10] sm:$0xf]
  %v816 = vld [vmem:[%s8 + $0x14] sm:$0xf]
  %v817 = vld [vmem:[%s8 + $0x18] sm:$0xf]
  %v818 = vld [vmem:[%s8 + $0x1c] sm:$0xf]
  %v823 = vunpack.c.l.b16 %v815
  %v824 = vunpack.c.l.b16 %v816
  %v825 = vunpack.c.l.b16 %v817
  %v826 = vunpack.c.l.b16 %v818
  %v827 = vpack.c.b16 %v824, %v823
  %v828 = vpack.c.b16 %v826, %v825
  %v832 = vsel %vm465, %v814, 0
  %834 = vmatprep.subr.bf16.mxu0 0
  %835 = vmatpush1.bf16.msra.mxu0 %v827
  %836 = vmatprep.subr.bf16.mxu0 0
  %837 = vmatpush1.bf16.msra.mxu0 %v828
  %838 = vmatprep.subr.bf16.mxu0 0
  %839 = vmatpush1.bf16.msra.mxu0 0
  %840 = vmatprep.subr.bf16.mxu0 0
  %841 = vmatpush1.bf16.msra.mxu0 0
  %842 = vmatprep.subr.bf16.mxu0 0
  %843 = vmatpush1.bf16.msra.mxu0 0
  %844 = vmatprep.subr.bf16.mxu0 0
  %845 = vmatpush1.bf16.msra.mxu0 0
  %846 = vmatprep.subr.bf16.mxu0 0
  %847 = vmatpush1.bf16.msra.mxu0 0
  %848 = vmatprep.subr.bf16.mxu0 0
  %849 = vmatpush1.bf16.msra.mxu0 0
  %850 = vmatprep.subr.bf16.mxu0 0
  %851 = vmatpush1.bf16.msra.mxu0 0
  %852 = vmatprep.subr.bf16.mxu0 0
  %853 = vmatpush1.bf16.msra.mxu0 0
  %854 = vmatprep.subr.bf16.mxu0 0
  %855 = vmatpush1.bf16.msra.mxu0 0
  %856 = vmatprep.subr.bf16.mxu0 0
  %857 = vmatpush1.bf16.msra.mxu0 0
  %858 = vmatprep.subr.bf16.mxu0 0
  %859 = vmatpush1.bf16.msra.mxu0 0
  %860 = vmatprep.subr.bf16.mxu0 0
  %861 = vmatpush1.bf16.msra.mxu0 0
  %862 = vmatprep.subr.bf16.mxu0 0
  %863 = vmatpush1.bf16.msra.mxu0 0
  %864 = vmatprep.subr.bf16.mxu0 0
  %865 = vmatpush1.bf16.msra.mxu0 0
  %866 = vmatprep.mubr.bf16.mxu0 0
  %867 = vmatmul.mubr.bf16.gmra.mrb[0].mxu0 %v832
  %v868 = vpop.f32.mrb[0].mxu0
  %v869 = vadd.f32 0.0, %v868
  %v870 = vpop.f32.mrb[0].mxu0
  %v871 = vpop.f32.mrb[0].mxu0
  %v872 = vpop.f32.mrb[0].mxu0
  %873 = vdwg.mxu0
  %v878 = vunpack.c.l.b16 %v587
  %v879 = vunpack.c.l.b16 %v588
  %v880 = vunpack.c.l.b16 %v589
  %v881 = vunpack.c.l.b16 %v590
  %v882 = vpack.c.b16 %v879, %v878
  %v883 = vpack.c.b16 %v881, %v880
  %v887 = vsel %vm465, %v586, 0
  %889 = vmatprep.subr.bf16.mxu0 0
  %890 = vmatpush1.bf16.msra.mxu0 %v882
  %891 = vmatprep.subr.bf16.mxu0 0
  %892 = vmatpush1.bf16.msra.mxu0 %v883
  %893 = vmatprep.subr.bf16.mxu0 0
  %894 = vmatpush1.bf16.msra.mxu0 0
  %895 = vmatprep.subr.bf16.mxu0 0
  %896 = vmatpush1.bf16.msra.mxu0 0
  %897 = vmatprep.subr.bf16.mxu0 0
  %898 = vmatpush1.bf16.msra.mxu0 0
  %899 = vmatprep.subr.bf16.mxu0 0
  %900 = vmatpush1.bf16.msra.mxu0 0
  %901 = vmatprep.subr.bf16.mxu0 0
  %902 = vmatpush1.bf16.msra.mxu0 0
  %903 = vmatprep.subr.bf16.mxu0 0
  %904 = vmatpush1.bf16.msra.mxu0 0
  %905 = vmatprep.subr.bf16.mxu0 0
  %906 = vmatpush1.bf16.msra.mxu0 0
  %907 = vmatprep.subr.bf16.mxu0 0
  %908 = vmatpush1.bf16.msra.mxu0 0
  %909 = vmatprep.subr.bf16.mxu0 0
  %910 = vmatpush1.bf16.msra.mxu0 0
  %911 = vmatprep.subr.bf16.mxu0 0
  %912 = vmatpush1.bf16.msra.mxu0 0
  %913 = vmatprep.subr.bf16.mxu0 0
  %914 = vmatpush1.bf16.msra.mxu0 0
  %915 = vmatprep.subr.bf16.mxu0 0
  %916 = vmatpush1.bf16.msra.mxu0 0
  %917 = vmatprep.subr.bf16.mxu0 0
  %918 = vmatpush1.bf16.msra.mxu0 0
  %919 = vmatprep.subr.bf16.mxu0 0
  %920 = vmatpush1.bf16.msra.mxu0 0
  %921 = vmatprep.mubr.bf16.mxu0 0
  %922 = vmatmul.mubr.bf16.gmra.mrb[0].mxu0 %v887
  %v923 = vpop.f32.mrb[0].mxu0
  %v924 = vadd.f32 %v869, %v923
  %v925 = vpop.f32.mrb[0].mxu0
  %v926 = vpop.f32.mrb[0].mxu0
  %v927 = vpop.f32.mrb[0].mxu0
  %928 = vdwg.mxu0
  %929 = vrot.lane.b32.xlu0 %v344, 64
  %v930 = vpop.permute.xlu0 %929
  %931 = vrot.lane.b32.xlu0 %v368, 64
  %v932 = vpop.permute.xlu0 %931
  %933 = vrot.lane.b32.xlu0 %v360, 96
  %v934 = vpop.permute.xlu0 %933
  %935 = vrot.lane.b32.xlu0 %v361, 96
  %v936 = vpop.permute.xlu0 %935
  %937 = vrot.lane.b32.xlu0 %v362, 96
  %v938 = vpop.permute.xlu0 %937
  %939 = vrot.lane.b32.xlu0 %v363, 96
  %v940 = vpop.permute.xlu0 %939
  %v941 = vsel %vm369, %v930, 0
  %v943 = vsel %vm369, %v932, 0
  %v945 = vsel %vm369, %v934, 0
  %v947 = vsel %vm369, %v936, 0
  %v949 = vsel %vm369, %v938, 0
  %v951 = vsel %vm369, %v940, 0
  %953 = vmatprep.subr.mxu0 0.0
  %954 = vmatpush1.xpose.msra.mxu0 %v945
  %955 = vmatprep.subr.mxu0 0.0
  %956 = vmatpush1.xpose.msra.mxu0 %v947
  %957 = vmatprep.subr.mxu0 0.0
  %958 = vmatpush1.xpose.msra.mxu0 %v949
  %959 = vmatprep.subr.mxu0 0.0
  %960 = vmatpush1.xpose.msra.mxu0 %v951
  %961 = vmatprep.subr.mxu0 0.0
  %962 = vmatpush1.xpose.msra.mxu0 0.0
  %963 = vmatprep.subr.mxu0 0.0
  %964 = vmatpush1.xpose.msra.mxu0 0.0
  %965 = vmatprep.subr.mxu0 0.0
  %966 = vmatpush1.xpose.msra.mxu0 0.0
  %967 = vmatprep.subr.mxu0 0.0
  %968 = vmatpush1.xpose.msra.mxu0 0.0
  %969 = vmatprep.subr.mxu0 0.0
  %970 = vmatpush1.xpose.msra.mxu0 0.0
  %971 = vmatprep.subr.mxu0 0.0
  %972 = vmatpush1.xpose.msra.mxu0 0.0
  %973 = vmatprep.subr.mxu0 0.0
  %974 = vmatpush1.xpose.msra.mxu0 0.0
  %975 = vmatprep.subr.mxu0 0.0
  %976 = vmatpush1.xpose.msra.mxu0 0.0
  %977 = vmatprep.subr.mxu0 0.0
  %978 = vmatpush1.xpose.msra.mxu0 0.0
  %979 = vmatprep.subr.mxu0 0.0
  %980 = vmatpush1.xpose.msra.mxu0 0.0
  %981 = vmatprep.subr.mxu0 0.0
  %982 = vmatpush1.xpose.msra.mxu0 0.0
  %983 = vmatprep.subr.mxu0 0.0
  %984 = vmatpush1.xpose.msra.mxu0 0.0
  %985 = vmatprep.subr.mxu0 0.0
  %986 = vmatpush1.xpose.msra.mxu0 0.0
  %987 = vmatprep.subr.mxu0 0.0
  %988 = vmatpush1.xpose.msra.mxu0 0.0
  %989 = vmatprep.subr.mxu0 0.0
  %990 = vmatpush1.xpose.msra.mxu0 0.0
  %991 = vmatprep.subr.mxu0 0.0
  %992 = vmatpush1.xpose.msra.mxu0 0.0
  %993 = vmatprep.subr.mxu0 0.0
  %994 = vmatpush1.xpose.msra.mxu0 0.0
  %995 = vmatprep.subr.mxu0 0.0
  %996 = vmatpush1.xpose.msra.mxu0 0.0
  %997 = vmatprep.subr.mxu0 0.0
  %998 = vmatpush1.xpose.msra.mxu0 0.0
  %999 = vmatprep.subr.mxu0 0.0
  %1000 = vmatpush1.xpose.msra.mxu0 0.0
  %1001 = vmatprep.subr.mxu0 0.0
  %1002 = vmatpush1.xpose.msra.mxu0 0.0
  %1003 = vmatprep.subr.mxu0 0.0
  %1004 = vmatpush1.xpose.msra.mxu0 0.0
  %1005 = vmatprep.subr.mxu0 0.0
  %1006 = vmatpush1.xpose.msra.mxu0 0.0
  %1007 = vmatprep.subr.mxu0 0.0
  %1008 = vmatpush1.xpose.msra.mxu0 0.0
  %1009 = vmatprep.subr.mxu0 0.0
  %1010 = vmatpush1.xpose.msra.mxu0 0.0
  %1011 = vmatprep.subr.mxu0 0.0
  %1012 = vmatpush1.xpose.msra.mxu0 0.0
  %1013 = vmatprep.subr.mxu0 0.0
  %1014 = vmatpush1.xpose.msra.mxu0 0.0
  %1015 = vmatprep.subr.mxu0 0.0
  %1016 = vmatpush1.xpose.msra.mxu0 0.0
  %1017 = vmatprep.mubr.f32.mxu0 0.0
  %1018 = vmatmul.mubr.f32.gmra.mrb[0].mxu0 %v941
  %v1019 = vpop.f32.mrb[0].mxu0
  %v1020 = vadd.f32 0.0, %v1019
  %v1021 = vpop.f32.mrb[0].mxu0
  %1022 = vmatprep.mubr.f32.mxu0 0.0
  %1023 = vmatmul.mubr.f32.gmra.mrb[0].mxu0 %v943
  %v1024 = vpop.f32.mrb[0].mxu0
  %v1025 = vadd.f32 0.0, %v1024
  %v1026 = vpop.f32.mrb[0].mxu0
  %1027 = vdwg.mxu0
  %v1028 = vmul.f32 %v1020, 0.25
  %v1029 = vmul.f32 %v1025, 0.25
  %v1030 = vadd.f32 %v1028, %v365
  %v1031 = vadd.f32 %v1029, %v365
  %v1032 = vsel %vm465, %v1030, -inf
  %1033 = vmax.xlane.f32.xlu0 %v1032
  %v1034 = vpop.xlane.xlu0 %1033
  %v1035 = vsel %vm465, %v1031, -inf
  %1036 = vmax.xlane.f32.xlu0 %v1035
  %v1037 = vpop.xlane.xlu0 %1036
  %v1038 = vsub.f32 %v1030, %v1034
  %v1039 = vsub.f32 %v1031, %v1037
  %v1040 = vmul.f32 %v1038, 1.442695
  %v1041 = vpow.pop %v1040
  %v1042 = vmul.f32 %v1039, 1.442695
  %v1043 = vpow.pop %v1042
  %v1044 = vsel %vm465, %v1041, 0.0
  %1045 = vadd.xlane.f32.xlu0 %v1044
  %v1046 = vpop.xlane.xlu0 %1045
  %v1047 = vsel %vm465, %v1043, 0.0
  %1048 = vadd.xlane.f32.xlu0 %v1047
  %v1049 = vpop.xlane.xlu0 %1048
  %v1050 = vrcp.pop %v1046
  %v1051 = vrcp.pop %v1049
  %v1052 = vmul.f32 %v1041, %v1050
  %v1053 = vmul.f32 %v1043, %v1051
  %1054 = vrot.lane.b32.xlu0 %v360, 32
  %v1055 = vpop.permute.xlu0 %1054
  %1056 = vrot.lane.b32.xlu0 %v361, 32
  %v1057 = vpop.permute.xlu0 %1056
  %1058 = vrot.lane.b32.xlu0 %v362, 32
  %v1059 = vpop.permute.xlu0 %1058
  %1060 = vrot.lane.b32.xlu0 %v363, 32
  %v1061 = vpop.permute.xlu0 %1060
  %v1067 = vsel %vm465, %v1052, 0
  %v1070 = vsel %vm465, %v1053, 0
  %1072 = vmatprep.subr.mxu0 0.0
  %1073 = vmatpush1.msra.mxu0 %v1055
  %1074 = vmatprep.subr.mxu0 0.0
  %1075 = vmatpush1.msra.mxu0 %v1057
  %1076 = vmatprep.subr.mxu0 0.0
  %1077 = vmatpush1.msra.mxu0 %v1059
  %1078 = vmatprep.subr.mxu0 0.0
  %1079 = vmatpush1.msra.mxu0 %v1061
  %1080 = vmatprep.subr.mxu0 0.0
  %1081 = vmatpush1.msra.mxu0 0.0
  %1082 = vmatprep.subr.mxu0 0.0
  %1083 = vmatpush1.msra.mxu0 0.0
  %1084 = vmatprep.subr.mxu0 0.0
  %1085 = vmatpush1.msra.mxu0 0.0
  %1086 = vmatprep.subr.mxu0 0.0
  %1087 = vmatpush1.msra.mxu0 0.0
  %1088 = vmatprep.subr.mxu0 0.0
  %1089 = vmatpush1.msra.mxu0 0.0
  %1090 = vmatprep.subr.mxu0 0.0
  %1091 = vmatpush1.msra.mxu0 0.0
  %1092 = vmatprep.subr.mxu0 0.0
  %1093 = vmatpush1.msra.mxu0 0.0
  %1094 = vmatprep.subr.mxu0 0.0
  %1095 = vmatpush1.msra.mxu0 0.0
  %1096 = vmatprep.subr.mxu0 0.0
  %1097 = vmatpush1.msra.mxu0 0.0
  %1098 = vmatprep.subr.mxu0 0.0
  %1099 = vmatpush1.msra.mxu0 0.0
  %1100 = vmatprep.subr.mxu0 0.0
  %1101 = vmatpush1.msra.mxu0 0.0
  %1102 = vmatprep.subr.mxu0 0.0
  %1103 = vmatpush1.msra.mxu0 0.0
  %1104 = vmatprep.subr.mxu0 0.0
  %1105 = vmatpush1.msra.mxu0 0.0
  %1106 = vmatprep.subr.mxu0 0.0
  %1107 = vmatpush1.msra.mxu0 0.0
  %1108 = vmatprep.subr.mxu0 0.0
  %1109 = vmatpush1.msra.mxu0 0.0
  %1110 = vmatprep.subr.mxu0 0.0
  %1111 = vmatpush1.msra.mxu0 0.0
  %1112 = vmatprep.subr.mxu0 0.0
  %1113 = vmatpush1.msra.mxu0 0.0
  %1114 = vmatprep.subr.mxu0 0.0
  %1115 = vmatpush1.msra.mxu0 0.0
  %1116 = vmatprep.subr.mxu0 0.0
  %1117 = vmatpush1.msra.mxu0 0.0
  %1118 = vmatprep.subr.mxu0 0.0
  %1119 = vmatpush1.msra.mxu0 0.0
  %1120 = vmatprep.subr.mxu0 0.0
  %1121 = vmatpush1.msra.mxu0 0.0
  %1122 = vmatprep.subr.mxu0 0.0
  %1123 = vmatpush1.msra.mxu0 0.0
  %1124 = vmatprep.subr.mxu0 0.0
  %1125 = vmatpush1.msra.mxu0 0.0
  %1126 = vmatprep.subr.mxu0 0.0
  %1127 = vmatpush1.msra.mxu0 0.0
  %1128 = vmatprep.subr.mxu0 0.0
  %1129 = vmatpush1.msra.mxu0 0.0
  %1130 = vmatprep.subr.mxu0 0.0
  %1131 = vmatpush1.msra.mxu0 0.0
  %1132 = vmatprep.subr.mxu0 0.0
  %1133 = vmatpush1.msra.mxu0 0.0
  %1134 = vmatprep.subr.mxu0 0.0
  %1135 = vmatpush1.msra.mxu0 0.0
  %1136 = vmatprep.mubr.f32.mxu0 0.0
  %1137 = vmatmul.mubr.f32.gmra.mrb[0].mxu0 %v1067
  %v1138 = vpop.f32.mrb[0].mxu0
  %v1139 = vadd.f32 0.0, %v1138
  %v1140 = vpop.f32.mrb[0].mxu0
  %1141 = vmatprep.mubr.f32.mxu0 0.0
  %1142 = vmatmul.mubr.f32.gmra.mrb[0].mxu0 %v1070
  %v1143 = vpop.f32.mrb[0].mxu0
  %v1144 = vadd.f32 0.0, %v1143
  %v1145 = vpop.f32.mrb[0].mxu0
  %1146 = vdwg.mxu0
  %1148 = vrot.lane.b32.xlu0 %v1144, 16
  %v1149 = vpop.permute.xlu0 %1148
  %v1151 = vsel %vm369, %v1139, %v1149
  %v1152 = vpack.c.bf16 %v1151, %v1151
  %v1153 = vld [vmem:[%s8 + $0x20] sm:$0xf]
  %v1154 = vld [vmem:[%s8 + $0x24] sm:$0xf]
  %v1155 = vld [vmem:[%s8 + $0x28] sm:$0xf]
  %v1156 = vld [vmem:[%s8 + $0x2c] sm:$0xf]
  %v1161 = vunpack.c.l.b16 %v1153
  %v1162 = vunpack.c.l.b16 %v1154
  %v1163 = vunpack.c.l.b16 %v1155
  %v1164 = vunpack.c.l.b16 %v1156
  %v1165 = vpack.c.b16 %v1162, %v1161
  %v1166 = vpack.c.b16 %v1164, %v1163
  %v1170 = vsel %vm465, %v1152, 0
  %1172 = vmatprep.subr.bf16.mxu0 0
  %1173 = vmatpush1.bf16.msra.mxu0 %v1165
  %1174 = vmatprep.subr.bf16.mxu0 0
  %1175 = vmatpush1.bf16.msra.mxu0 %v1166
  %1176 = vmatprep.subr.bf16.mxu0 0
  %1177 = vmatpush1.bf16.msra.mxu0 0
  %1178 = vmatprep.subr.bf16.mxu0 0
  %1179 = vmatpush1.bf16.msra.mxu0 0
  %1180 = vmatprep.subr.bf16.mxu0 0
  %1181 = vmatpush1.bf16.msra.mxu0 0
  %1182 = vmatprep.subr.bf16.mxu0 0
  %1183 = vmatpush1.bf16.msra.mxu0 0
  %1184 = vmatprep.subr.bf16.mxu0 0
  %1185 = vmatpush1.bf16.msra.mxu0 0
  %1186 = vmatprep.subr.bf16.mxu0 0
  %1187 = vmatpush1.bf16.msra.mxu0 0
  %1188 = vmatprep.subr.bf16.mxu0 0
  %1189 = vmatpush1.bf16.msra.mxu0 0
  %1190 = vmatprep.subr.bf16.mxu0 0
  %1191 = vmatpush1.bf16.msra.mxu0 0
  %1192 = vmatprep.subr.bf16.mxu0 0
  %1193 = vmatpush1.bf16.msra.mxu0 0
  %1194 = vmatprep.subr.bf16.mxu0 0
  %1195 = vmatpush1.bf16.msra.mxu0 0
  %1196 = vmatprep.subr.bf16.mxu0 0
  %1197 = vmatpush1.bf16.msra.mxu0 0
  %1198 = vmatprep.subr.bf16.mxu0 0
  %1199 = vmatpush1.bf16.msra.mxu0 0
  %1200 = vmatprep.subr.bf16.mxu0 0
  %1201 = vmatpush1.bf16.msra.mxu0 0
  %1202 = vmatprep.subr.bf16.mxu0 0
  %1203 = vmatpush1.bf16.msra.mxu0 0
  %1204 = vmatprep.mubr.bf16.mxu0 0
  %1205 = vmatmul.mubr.bf16.gmra.mrb[0].mxu0 %v1170
  %v1206 = vpop.f32.mrb[0].mxu0
  %v1207 = vadd.f32 0.0, %v1206
  %v1208 = vpop.f32.mrb[0].mxu0
  %v1209 = vpop.f32.mrb[0].mxu0
  %v1210 = vpop.f32.mrb[0].mxu0
  %1211 = vdwg.mxu0
  %v1212 = vadd.f32 %v924, %v1207
  %1213 = vrot.lane.b32.xlu0 %v344, 32
  %v1214 = vpop.permute.xlu0 %1213
  %1215 = vrot.lane.b32.xlu0 %v368, 32
  %v1216 = vpop.permute.xlu0 %1215
  %1217 = vrot.lane.b32.xlu0 %v360, 80
  %v1218 = vpop.permute.xlu0 %1217
  %1219 = vrot.lane.b32.xlu0 %v361, 80
  %v1220 = vpop.permute.xlu0 %1219
  %1221 = vrot.lane.b32.xlu0 %v362, 80
  %v1222 = vpop.permute.xlu0 %1221
  %1223 = vrot.lane.b32.xlu0 %v363, 80
  %v1224 = vpop.permute.xlu0 %1223
  %v1225 = vsel %vm369, %v1214, 0
  %v1227 = vsel %vm369, %v1216, 0
  %v1229 = vsel %vm369, %v1218, 0
  %v1231 = vsel %vm369, %v1220, 0
  %v1233 = vsel %vm369, %v1222, 0
  %v1235 = vsel %vm369, %v1224, 0
  %1237 = vmatprep.subr.mxu0 0.0
  %1238 = vmatpush1.xpose.msra.mxu0 %v1229
  %1239 = vmatprep.subr.mxu0 0.0
  %1240 = vmatpush1.xpose.msra.mxu0 %v1231
  %1241 = vmatprep.subr.mxu0 0.0
  %1242 = vmatpush1.xpose.msra.mxu0 %v1233
  %1243 = vmatprep.subr.mxu0 0.0
  %1244 = vmatpush1.xpose.msra.mxu0 %v1235
  %1245 = vmatprep.subr.mxu0 0.0
  %1246 = vmatpush1.xpose.msra.mxu0 0.0
  %1247 = vmatprep.subr.mxu0 0.0
  %1248 = vmatpush1.xpose.msra.mxu0 0.0
  %1249 = vmatprep.subr.mxu0 0.0
  %1250 = vmatpush1.xpose.msra.mxu0 0.0
  %1251 = vmatprep.subr.mxu0 0.0
  %1252 = vmatpush1.xpose.msra.mxu0 0.0
  %1253 = vmatprep.subr.mxu0 0.0
  %1254 = vmatpush1.xpose.msra.mxu0 0.0
  %1255 = vmatprep.subr.mxu0 0.0
  %1256 = vmatpush1.xpose.msra.mxu0 0.0
  %1257 = vmatprep.subr.mxu0 0.0
  %1258 = vmatpush1.xpose.msra.mxu0 0.0
  %1259 = vmatprep.subr.mxu0 0.0
  %1260 = vmatpush1.xpose.msra.mxu0 0.0
  %1261 = vmatprep.subr.mxu0 0.0
  %1262 = vmatpush1.xpose.msra.mxu0 0.0
  %1263 = vmatprep.subr.mxu0 0.0
  %1264 = vmatpush1.xpose.msra.mxu0 0.0
  %1265 = vmatprep.subr.mxu0 0.0
  %1266 = vmatpush1.xpose.msra.mxu0 0.0
  %1267 = vmatprep.subr.mxu0 0.0
  %1268 = vmatpush1.xpose.msra.mxu0 0.0
  %1269 = vmatprep.subr.mxu0 0.0
  %1270 = vmatpush1.xpose.msra.mxu0 0.0
  %1271 = vmatprep.subr.mxu0 0.0
  %1272 = vmatpush1.xpose.msra.mxu0 0.0
  %1273 = vmatprep.subr.mxu0 0.0
  %1274 = vmatpush1.xpose.msra.mxu0 0.0
  %1275 = vmatprep.subr.mxu0 0.0
  %1276 = vmatpush1.xpose.msra.mxu0 0.0
  %1277 = vmatprep.subr.mxu0 0.0
  %1278 = vmatpush1.xpose.msra.mxu0 0.0
  %1279 = vmatprep.subr.mxu0 0.0
  %1280 = vmatpush1.xpose.msra.mxu0 0.0
  %1281 = vmatprep.subr.mxu0 0.0
  %1282 = vmatpush1.xpose.msra.mxu0 0.0
  %1283 = vmatprep.subr.mxu0 0.0
  %1284 = vmatpush1.xpose.msra.mxu0 0.0
  %1285 = vmatprep.subr.mxu0 0.0
  %1286 = vmatpush1.xpose.msra.mxu0 0.0
  %1287 = vmatprep.subr.mxu0 0.0
  %1288 = vmatpush1.xpose.msra.mxu0 0.0
  %1289 = vmatprep.subr.mxu0 0.0
  %1290 = vmatpush1.xpose.msra.mxu0 0.0
  %1291 = vmatprep.subr.mxu0 0.0
  %1292 = vmatpush1.xpose.msra.mxu0 0.0
  %1293 = vmatprep.subr.mxu0 0.0
  %1294 = vmatpush1.xpose.msra.mxu0 0.0
  %1295 = vmatprep.subr.mxu0 0.0
  %1296 = vmatpush1.xpose.msra.mxu0 0.0
  %1297 = vmatprep.subr.mxu0 0.0
  %1298 = vmatpush1.xpose.msra.mxu0 0.0
  %1299 = vmatprep.subr.mxu0 0.0
  %1300 = vmatpush1.xpose.msra.mxu0 0.0
  %1301 = vmatprep.mubr.f32.mxu0 0.0
  %1302 = vmatmul.mubr.f32.gmra.mrb[0].mxu0 %v1225
  %v1303 = vpop.f32.mrb[0].mxu0
  %v1304 = vadd.f32 0.0, %v1303
  %v1305 = vpop.f32.mrb[0].mxu0
  %1306 = vmatprep.mubr.f32.mxu0 0.0
  %1307 = vmatmul.mubr.f32.gmra.mrb[0].mxu0 %v1227
  %v1308 = vpop.f32.mrb[0].mxu0
  %v1309 = vadd.f32 0.0, %v1308
  %v1310 = vpop.f32.mrb[0].mxu0
  %1311 = vdwg.mxu0
  %v1312 = vmul.f32 %v1304, 0.25
  %v1313 = vmul.f32 %v1309, 0.25
  %v1314 = vadd.f32 %v1312, %v365
  %v1315 = vadd.f32 %v1313, %v365
  %v1316 = vsel %vm465, %v1314, -inf
  %1317 = vmax.xlane.f32.xlu0 %v1316
  %v1318 = vpop.xlane.xlu0 %1317
  %v1319 = vsel %vm465, %v1315, -inf
  %1320 = vmax.xlane.f32.xlu0 %v1319
  %v1321 = vpop.xlane.xlu0 %1320
  %v1322 = vsub.f32 %v1314, %v1318
  %v1323 = vsub.f32 %v1315, %v1321
  %v1324 = vmul.f32 %v1322, 1.442695
  %v1325 = vpow.pop %v1324
  %v1326 = vmul.f32 %v1323, 1.442695
  %v1327 = vpow.pop %v1326
  %v1328 = vsel %vm465, %v1325, 0.0
  %1329 = vadd.xlane.f32.xlu0 %v1328
  %v1330 = vpop.xlane.xlu0 %1329
  %v1331 = vsel %vm465, %v1327, 0.0
  %1332 = vadd.xlane.f32.xlu0 %v1331
  %v1333 = vpop.xlane.xlu0 %1332
  %v1334 = vrcp.pop %v1330
  %v1335 = vrcp.pop %v1333
  %v1336 = vmul.f32 %v1325, %v1334
  %v1337 = vmul.f32 %v1327, %v1335
  %1338 = vrot.lane.b32.xlu0 %v360, 16
  %v1339 = vpop.permute.xlu0 %1338
  %1340 = vrot.lane.b32.xlu0 %v361, 16
  %v1341 = vpop.permute.xlu0 %1340
  %1342 = vrot.lane.b32.xlu0 %v362, 16
  %v1343 = vpop.permute.xlu0 %1342
  %1344 = vrot.lane.b32.xlu0 %v363, 16
  %v1345 = vpop.permute.xlu0 %1344
  %v1351 = vsel %vm465, %v1336, 0
  %v1354 = vsel %vm465, %v1337, 0
  %1356 = vmatprep.subr.mxu0 0.0
  %1357 = vmatpush1.msra.mxu0 %v1339
  %1358 = vmatprep.subr.mxu0 0.0
  %1359 = vmatpush1.msra.mxu0 %v1341
  %1360 = vmatprep.subr.mxu0 0.0
  %1361 = vmatpush1.msra.mxu0 %v1343
  %1362 = vmatprep.subr.mxu0 0.0
  %1363 = vmatpush1.msra.mxu0 %v1345
  %1364 = vmatprep.subr.mxu0 0.0
  %1365 = vmatpush1.msra.mxu0 0.0
  %1366 = vmatprep.subr.mxu0 0.0
  %1367 = vmatpush1.msra.mxu0 0.0
  %1368 = vmatprep.subr.mxu0 0.0
  %1369 = vmatpush1.msra.mxu0 0.0
  %1370 = vmatprep.subr.mxu0 0.0
  %1371 = vmatpush1.msra.mxu0 0.0
  %1372 = vmatprep.subr.mxu0 0.0
  %1373 = vmatpush1.msra.mxu0 0.0
  %1374 = vmatprep.subr.mxu0 0.0
  %1375 = vmatpush1.msra.mxu0 0.0
  %1376 = vmatprep.subr.mxu0 0.0
  %1377 = vmatpush1.msra.mxu0 0.0
  %1378 = vmatprep.subr.mxu0 0.0
  %1379 = vmatpush1.msra.mxu0 0.0
  %1380 = vmatprep.subr.mxu0 0.0
  %1381 = vmatpush1.msra.mxu0 0.0
  %1382 = vmatprep.subr.mxu0 0.0
  %1383 = vmatpush1.msra.mxu0 0.0
  %1384 = vmatprep.subr.mxu0 0.0
  %1385 = vmatpush1.msra.mxu0 0.0
  %1386 = vmatprep.subr.mxu0 0.0
  %1387 = vmatpush1.msra.mxu0 0.0
  %1388 = vmatprep.subr.mxu0 0.0
  %1389 = vmatpush1.msra.mxu0 0.0
  %1390 = vmatprep.subr.mxu0 0.0
  %1391 = vmatpush1.msra.mxu0 0.0
  %1392 = vmatprep.subr.mxu0 0.0
  %1393 = vmatpush1.msra.mxu0 0.0
  %1394 = vmatprep.subr.mxu0 0.0
  %1395 = vmatpush1.msra.mxu0 0.0
  %1396 = vmatprep.subr.mxu0 0.0
  %1397 = vmatpush1.msra.mxu0 0.0
  %1398 = vmatprep.subr.mxu0 0.0
  %1399 = vmatpush1.msra.mxu0 0.0
  %1400 = vmatprep.subr.mxu0 0.0
  %1401 = vmatpush1.msra.mxu0 0.0
  %1402 = vmatprep.subr.mxu0 0.0
  %1403 = vmatpush1.msra.mxu0 0.0
  %1404 = vmatprep.subr.mxu0 0.0
  %1405 = vmatpush1.msra.mxu0 0.0
  %1406 = vmatprep.subr.mxu0 0.0
  %1407 = vmatpush1.msra.mxu0 0.0
  %1408 = vmatprep.subr.mxu0 0.0
  %1409 = vmatpush1.msra.mxu0 0.0
  %1410 = vmatprep.subr.mxu0 0.0
  %1411 = vmatpush1.msra.mxu0 0.0
  %1412 = vmatprep.subr.mxu0 0.0
  %1413 = vmatpush1.msra.mxu0 0.0
  %1414 = vmatprep.subr.mxu0 0.0
  %1415 = vmatpush1.msra.mxu0 0.0
  %1416 = vmatprep.subr.mxu0 0.0
  %1417 = vmatpush1.msra.mxu0 0.0
  %1418 = vmatprep.subr.mxu0 0.0
  %1419 = vmatpush1.msra.mxu0 0.0
  %1420 = vmatprep.mubr.f32.mxu0 0.0
  %1421 = vmatmul.mubr.f32.gmra.mrb[0].mxu0 %v1351
  %v1422 = vpop.f32.mrb[0].mxu0
  %v1423 = vadd.f32 0.0, %v1422
  %v1424 = vpop.f32.mrb[0].mxu0
  %1425 = vmatprep.mubr.f32.mxu0 0.0
  %1426 = vmatmul.mubr.f32.gmra.mrb[0].mxu0 %v1354
  %v1427 = vpop.f32.mrb[0].mxu0
  %v1428 = vadd.f32 0.0, %v1427
  %v1429 = vpop.f32.mrb[0].mxu0
  %1430 = vdwg.mxu0
  %1432 = vrot.lane.b32.xlu0 %v1428, 16
  %v1433 = vpop.permute.xlu0 %1432
  %v1435 = vsel %vm369, %v1423, %v1433
  %v1436 = vpack.c.bf16 %v1435, %v1435
  %v1437 = vld [vmem:[%s8 + $0x30] sm:$0xf]
  %v1438 = vld [vmem:[%s8 + $0x34] sm:$0xf]
  %v1439 = vld [vmem:[%s8 + $0x38] sm:$0xf]
  %v1440 = vld [vmem:[%s8 + $0x3c] sm:$0xf]
  %v1445 = vunpack.c.l.b16 %v1437
  %v1446 = vunpack.c.l.b16 %v1438
  %v1447 = vunpack.c.l.b16 %v1439
  %v1448 = vunpack.c.l.b16 %v1440
  %v1449 = vpack.c.b16 %v1446, %v1445
  %v1450 = vpack.c.b16 %v1448, %v1447
  %v1454 = vsel %vm465, %v1436, 0
  %1456 = vmatprep.subr.bf16.mxu0 0
  %1457 = vmatpush1.bf16.msra.mxu0 %v1449
  %1458 = vmatprep.subr.bf16.mxu0 0
  %1459 = vmatpush1.bf16.msra.mxu0 %v1450
  %1460 = vmatprep.subr.bf16.mxu0 0
  %1461 = vmatpush1.bf16.msra.mxu0 0
  %1462 = vmatprep.subr.bf16.mxu0 0
  %1463 = vmatpush1.bf16.msra.mxu0 0
  %1464 = vmatprep.subr.bf16.mxu0 0
  %1465 = vmatpush1.bf16.msra.mxu0 0
  %1466 = vmatprep.subr.bf16.mxu0 0
  %1467 = vmatpush1.bf16.msra.mxu0 0
  %1468 = vmatprep.subr.bf16.mxu0 0
  %1469 = vmatpush1.bf16.msra.mxu0 0
  %1470 = vmatprep.subr.bf16.mxu0 0
  %1471 = vmatpush1.bf16.msra.mxu0 0
  %1472 = vmatprep.subr.bf16.mxu0 0
  %1473 = vmatpush1.bf16.msra.mxu0 0
  %1474 = vmatprep.subr.bf16.mxu0 0
  %1475 = vmatpush1.bf16.msra.mxu0 0
  %1476 = vmatprep.subr.bf16.mxu0 0
  %1477 = vmatpush1.bf16.msra.mxu0 0
  %1478 = vmatprep.subr.bf16.mxu0 0
  %1479 = vmatpush1.bf16.msra.mxu0 0
  %1480 = vmatprep.subr.bf16.mxu0 0
  %1481 = vmatpush1.bf16.msra.mxu0 0
  %1482 = vmatprep.subr.bf16.mxu0 0
  %1483 = vmatpush1.bf16.msra.mxu0 0
  %1484 = vmatprep.subr.bf16.mxu0 0
  %1485 = vmatpush1.bf16.msra.mxu0 0
  %1486 = vmatprep.subr.bf16.mxu0 0
  %1487 = vmatpush1.bf16.msra.mxu0 0
  %1488 = vmatprep.mubr.bf16.mxu0 0
  %1489 = vmatmul.mubr.bf16.gmra.mrb[0].mxu0 %v1454
  %v1490 = vpop.f32.mrb[0].mxu0
  %v1491 = vadd.f32 0.0, %v1490
  %v1492 = vpop.f32.mrb[0].mxu0
  %v1493 = vpop.f32.mrb[0].mxu0
  %v1494 = vpop.f32.mrb[0].mxu0
  %1495 = vdwg.mxu0
  %v1496 = vadd.f32 %v1212, %v1491
  %v1497 = vadd.f32 %v46, %v1496
  %v1498 = vld [vmem:[%s9] sm:$0x1]
  %v1499 = vmul.f32 %v1497, %v1497
  %1500 = vadd.xlane.f32.xlu0 %v1499
  %v1501 = vpop.xlane.xlu0 %1500
  %v1502 = vmul.f32 %v1501, %v51
  %v1503 = vadd.f32 %v1502, 1e-05
  %v1504 = vrsqrt.pop %v1503
  %v1505 = vmul.f32 %v1497, %v1504
  %v1507 = vlaneseq
  %v1508 = vshrl.u32 %v1507, 7
  %v1509 = vsub.s32 0, %v1508
  %v1510 = vrot.slane %v1498, %v1509
  %v1512 = vmul.f32 %v1505, %v1510
  %v1513 = vpack.c.bf16 %v1512, %v1512
  %v1514 = vld [vmem:[%s10] sm:$0xff]
  %v1515 = vld [vmem:[%s10 + $0x8] sm:$0xff]
  %v1516 = vld [vmem:[%s10 + $0x10] sm:$0xff]
  %v1517 = vld [vmem:[%s10 + $0x18] sm:$0xff]
  %v1518 = vld [vmem:[%s10 + $0x20] sm:$0xff]
  %v1519 = vld [vmem:[%s10 + $0x28] sm:$0xff]
  %v1520 = vld [vmem:[%s10 + $0x30] sm:$0xff]
  %v1521 = vld [vmem:[%s10 + $0x38] sm:$0xff]
  %v1522 = vld [vmem:[%s10 + $0x40] sm:$0xff]
  %v1523 = vld [vmem:[%s10 + $0x48] sm:$0xff]
  %v1524 = vld [vmem:[%s10 + $0x50] sm:$0xff]
  %v1525 = vld [vmem:[%s10 + $0x58] sm:$0xff]
  %v1526 = vld [vmem:[%s10 + $0x60] sm:$0xff]
  %v1527 = vld [vmem:[%s10 + $0x68] sm:$0xff]
  %v1528 = vld [vmem:[%s10 + $0x70] sm:$0xff]
  %v1529 = vld [vmem:[%s10 + $0x78] sm:$0xff]
  %v1530 = vld [vmem:[%s10 + $0x80] sm:$0xff]
  %v1531 = vld [vmem:[%s10 + $0x88] sm:$0xff]
  %v1532 = vld [vmem:[%s10 + $0x90] sm:$0xff]
  %v1533 = vld [vmem:[%s10 + $0x98] sm:$0xff]
  %v1534 = vld [vmem:[%s10 + $0xa0] sm:$0xff]
  %v1535 = vld [vmem:[%s10 + $0xa8] sm:$0xff]
  %v1536 = vld [vmem:[%s10 + $0xb0] sm:$0xff]
  %v1537 = vld [vmem:[%s10 + $0xb8] sm:$0xff]
  %v1538 = vld [vmem:[%s10 + $0xc0] sm:$0xff]
  %v1539 = vld [vmem:[%s10 + $0xc8] sm:$0xff]
  %v1540 = vld [vmem:[%s10 + $0xd0] sm:$0xff]
  %v1541 = vld [vmem:[%s10 + $0xd8] sm:$0xff]
  %v1542 = vld [vmem:[%s10 + $0xe0] sm:$0xff]
  %v1543 = vld [vmem:[%s10 + $0xe8] sm:$0xff]
  %v1544 = vld [vmem:[%s10 + $0xf0] sm:$0xff]
  %v1545 = vld [vmem:[%s10 + $0xf8] sm:$0xff]
  %v1578 = vunpack.c.l.b16 %v1514
  %v1579 = vunpack.c.h.b16 %v1514
  %v1580 = vunpack.c.l.b16 %v1515
  %v1581 = vunpack.c.h.b16 %v1515
  %v1582 = vunpack.c.l.b16 %v1516
  %v1583 = vunpack.c.h.b16 %v1516
  %v1584 = vunpack.c.l.b16 %v1517
  %v1585 = vunpack.c.h.b16 %v1517
  %v1586 = vunpack.c.l.b16 %v1518
  %v1587 = vunpack.c.h.b16 %v1518
  %v1588 = vunpack.c.l.b16 %v1519
  %v1589 = vunpack.c.h.b16 %v1519
  %v1590 = vunpack.c.l.b16 %v1520
  %v1591 = vunpack.c.h.b16 %v1520
  %v1592 = vunpack.c.l.b16 %v1521
  %v1593 = vunpack.c.h.b16 %v1521
  %v1594 = vunpack.c.l.b16 %v1522
  %v1595 = vunpack.c.h.b16 %v1522
  %v1596 = vunpack.c.l.b16 %v1523
  %v1597 = vunpack.c.h.b16 %v1523
  %v1598 = vunpack.c.l.b16 %v1524
  %v1599 = vunpack.c.h.b16 %v1524
  %v1600 = vunpack.c.l.b16 %v1525
  %v1601 = vunpack.c.h.b16 %v1525
  %v1602 = vunpack.c.l.b16 %v1526
  %v1603 = vunpack.c.h.b16 %v1526
  %v1604 = vunpack.c.l.b16 %v1527
  %v1605 = vunpack.c.h.b16 %v1527
  %v1606 = vunpack.c.l.b16 %v1528
  %v1607 = vunpack.c.h.b16 %v1528
  %v1608 = vunpack.c.l.b16 %v1529
  %v1609 = vunpack.c.h.b16 %v1529
  %v1610 = vunpack.c.l.b16 %v1530
  %v1611 = vunpack.c.h.b16 %v1530
  %v1612 = vunpack.c.l.b16 %v1531
  %v1613 = vunpack.c.h.b16 %v1531
  %v1614 = vunpack.c.l.b16 %v1532
  %v1615 = vunpack.c.h.b16 %v1532
  %v1616 = vunpack.c.l.b16 %v1533
  %v1617 = vunpack.c.h.b16 %v1533
  %v1618 = vunpack.c.l.b16 %v1534
  %v1619 = vunpack.c.h.b16 %v1534
  %v1620 = vunpack.c.l.b16 %v1535
  %v1621 = vunpack.c.h.b16 %v1535
  %v1622 = vunpack.c.l.b16 %v1536
  %v1623 = vunpack.c.h.b16 %v1536
  %v1624 = vunpack.c.l.b16 %v1537
  %v1625 = vunpack.c.h.b16 %v1537
  %v1626 = vunpack.c.l.b16 %v1538
  %v1627 = vunpack.c.h.b16 %v1538
  %v1628 = vunpack.c.l.b16 %v1539
  %v1629 = vunpack.c.h.b16 %v1539
  %v1630 = vunpack.c.l.b16 %v1540
  %v1631 = vunpack.c.h.b16 %v1540
  %v1632 = vunpack.c.l.b16 %v1541
  %v1633 = vunpack.c.h.b16 %v1541
  %v1634 = vunpack.c.l.b16 %v1542
  %v1635 = vunpack.c.h.b16 %v1542
  %v1636 = vunpack.c.l.b16 %v1543
  %v1637 = vunpack.c.h.b16 %v1543
  %v1638 = vunpack.c.l.b16 %v1544
  %v1639 = vunpack.c.h.b16 %v1544
  %v1640 = vunpack.c.l.b16 %v1545
  %v1641 = vunpack.c.h.b16 %v1545
  %v1642 = vpack.c.b16 %v1582, %v1578
  %v1643 = vpack.c.b16 %v1583, %v1579
  %v1644 = vpack.c.b16 %v1584, %v1580
  %v1645 = vpack.c.b16 %v1585, %v1581
  %v1646 = vpack.c.b16 %v1590, %v1586
  %v1647 = vpack.c.b16 %v1591, %v1587
  %v1648 = vpack.c.b16 %v1592, %v1588
  %v1649 = vpack.c.b16 %v1593, %v1589
  %v1650 = vpack.c.b16 %v1598, %v1594
  %v1651 = vpack.c.b16 %v1599, %v1595
  %v1652 = vpack.c.b16 %v1600, %v1596
  %v1653 = vpack.c.b16 %v1601, %v1597
  %v1654 = vpack.c.b16 %v1606, %v1602
  %v1655 = vpack.c.b16 %v1607, %v1603
  %v1656 = vpack.c.b16 %v1608, %v1604
  %v1657 = vpack.c.b16 %v1609, %v1605
  %v1658 = vpack.c.b16 %v1614, %v1610
  %v1659 = vpack.c.b16 %v1615, %v1611
  %v1660 = vpack.c.b16 %v1616, %v1612
  %v1661 = vpack.c.b16 %v1617, %v1613
  %v1662 = vpack.c.b16 %v1622, %v1618
  %v1663 = vpack.c.b16 %v1623, %v1619
  %v1664 = vpack.c.b16 %v1624, %v1620
  %v1665 = vpack.c.b16 %v1625, %v1621
  %v1666 = vpack.c.b16 %v1630, %v1626
  %v1667 = vpack.c.b16 %v1631, %v1627
  %v1668 = vpack.c.b16 %v1632, %v1628
  %v1669 = vpack.c.b16 %v1633, %v1629
  %v1670 = vpack.c.b16 %v1638, %v1634
  %v1671 = vpack.c.b16 %v1639, %v1635
  %v1672 = vpack.c.b16 %v1640, %v1636
  %v1673 = vpack.c.b16 %v1641, %v1637
  %1706 = vmatprep.subr.bf16.mxu0 %v1643
  %1707 = vmatpush1.bf16.msra.mxu0 %v1642
  %1708 = vmatprep.subr.bf16.mxu0 %v1647
  %1709 = vmatpush1.bf16.msra.mxu0 %v1646
  %1710 = vmatprep.subr.bf16.mxu0 %v1651
  %1711 = vmatpush1.bf16.msra.mxu0 %v1650
  %1712 = vmatprep.subr.bf16.mxu0 %v1655
  %1713 = vmatpush1.bf16.msra.mxu0 %v1654
  %1714 = vmatprep.subr.bf16.mxu0 %v1659
  %1715 = vmatpush1.bf16.msra.mxu0 %v1658
  %1716 = vmatprep.subr.bf16.mxu0 %v1663
  %1717 = vmatpush1.bf16.msra.mxu0 %v1662
  %1718 = vmatprep.subr.bf16.mxu0 %v1667
  %1719 = vmatpush1.bf16.msra.mxu0 %v1666
  %1720 = vmatprep.subr.bf16.mxu0 %v1671
  %1721 = vmatpush1.bf16.msra.mxu0 %v1670
  %1722 = vmatprep.subr.bf16.mxu0 0
  %1723 = vmatpush1.bf16.msra.mxu0 0
  %1724 = vmatprep.subr.bf16.mxu0 0
  %1725 = vmatpush1.bf16.msra.mxu0 0
  %1726 = vmatprep.subr.bf16.mxu0 0
  %1727 = vmatpush1.bf16.msra.mxu0 0
  %1728 = vmatprep.subr.bf16.mxu0 0
  %1729 = vmatpush1.bf16.msra.mxu0 0
  %1730 = vmatprep.subr.bf16.mxu0 0
  %1731 = vmatpush1.bf16.msra.mxu0 0
  %1732 = vmatprep.subr.bf16.mxu0 0
  %1733 = vmatpush1.bf16.msra.mxu0 0
  %1734 = vmatprep.subr.bf16.mxu0 0
  %1735 = vmatpush1.bf16.msra.mxu0 0
  %1736 = vmatprep.subr.bf16.mxu0 0
  %1737 = vmatpush1.bf16.msra.mxu0 0
  %1738 = vmatprep.mubr.bf16.mxu0 0
  %1739 = vmatmul.mubr.bf16.gmra.mrb[0].mxu0 %v1513
  %v1740 = vpop.f32.mrb[0].mxu0
  %v1741 = vadd.f32 0.0, %v1740
  %v1742 = vpop.f32.mrb[0].mxu0
  %v1743 = vadd.f32 0.0, %v1742
  %v1744 = vpop.f32.mrb[0].mxu0
  %v1745 = vpop.f32.mrb[0].mxu0
  %1746 = vdwg.mxu0
  %1747 = vmatprep.subr.bf16.mxu0 %v1645
  %1748 = vmatpush1.bf16.msra.mxu0 %v1644
  %1749 = vmatprep.subr.bf16.mxu0 %v1649
  %1750 = vmatpush1.bf16.msra.mxu0 %v1648
  %1751 = vmatprep.subr.bf16.mxu0 %v1653
  %1752 = vmatpush1.bf16.msra.mxu0 %v1652
  %1753 = vmatprep.subr.bf16.mxu0 %v1657
  %1754 = vmatpush1.bf16.msra.mxu0 %v1656
  %1755 = vmatprep.subr.bf16.mxu0 %v1661
  %1756 = vmatpush1.bf16.msra.mxu0 %v1660
  %1757 = vmatprep.subr.bf16.mxu0 %v1665
  %1758 = vmatpush1.bf16.msra.mxu0 %v1664
  %1759 = vmatprep.subr.bf16.mxu0 %v1669
  %1760 = vmatpush1.bf16.msra.mxu0 %v1668
  %1761 = vmatprep.subr.bf16.mxu0 %v1673
  %1762 = vmatpush1.bf16.msra.mxu0 %v1672
  %1763 = vmatprep.subr.bf16.mxu0 0
  %1764 = vmatpush1.bf16.msra.mxu0 0
  %1765 = vmatprep.subr.bf16.mxu0 0
  %1766 = vmatpush1.bf16.msra.mxu0 0
  %1767 = vmatprep.subr.bf16.mxu0 0
  %1768 = vmatpush1.bf16.msra.mxu0 0
  %1769 = vmatprep.subr.bf16.mxu0 0
  %1770 = vmatpush1.bf16.msra.mxu0 0
  %1771 = vmatprep.subr.bf16.mxu0 0
  %1772 = vmatpush1.bf16.msra.mxu0 0
  %1773 = vmatprep.subr.bf16.mxu0 0
  %1774 = vmatpush1.bf16.msra.mxu0 0
  %1775 = vmatprep.subr.bf16.mxu0 0
  %1776 = vmatpush1.bf16.msra.mxu0 0
  %1777 = vmatprep.subr.bf16.mxu0 0
  %1778 = vmatpush1.bf16.msra.mxu0 0
  %1779 = vmatprep.mubr.bf16.mxu0 0
  %1780 = vmatmul.mubr.bf16.gmra.mrb[0].mxu0 %v1513
  %v1781 = vpop.f32.mrb[0].mxu0
  %v1782 = vadd.f32 0.0, %v1781
  %v1783 = vpop.f32.mrb[0].mxu0
  %v1784 = vadd.f32 0.0, %v1783
  %v1785 = vpop.f32.mrb[0].mxu0
  %v1786 = vpop.f32.mrb[0].mxu0
  %1787 = vdwg.mxu0
  %v1788 = vxor.u32 %v1741, 2147483648
  %v1789 = vxor.u32 %v1743, 2147483648
  %v1790 = vmul.f32 %v1788, 1.442695
  %v1791 = vpow.pop %v1790
  %v1792 = vmul.f32 %v1789, 1.442695
  %v1793 = vpow.pop %v1792
  %v1794 = vadd.f32 %v1791, 1.0
  %v1795 = vadd.f32 %v1793, 1.0
  %v1796 = vrcp.pop %v1794
  %v1797 = vmul.f32 1.0, %v1796
  %v1798 = vrcp.pop %v1795
  %v1799 = vmul.f32 1.0, %v1798
  %v1800 = vmul.f32 %v1741, %v1797
  %v1801 = vmul.f32 %v1743, %v1799
  %v1802 = vmul.f32 %v1800, %v1782
  %v1803 = vmul.f32 %v1801, %v1784
  %v1804 = vpack.c.bf16 %v1802, %v1802
  %v1805 = vpack.c.bf16 %v1803, %v1803
  %v1806 = vld [vmem:[%s11] sm:$0xf]
  %v1807 = vld [vmem:[%s11 + $0x4] sm:$0xf]
  %v1808 = vld [vmem:[%s11 + $0x8] sm:$0xf]
  %v1809 = vld [vmem:[%s11 + $0xc] sm:$0xf]
  %v1810 = vld [vmem:[%s11 + $0x10] sm:$0xf]
  %v1811 = vld [vmem:[%s11 + $0x14] sm:$0xf]
  %v1812 = vld [vmem:[%s11 + $0x18] sm:$0xf]
  %v1813 = vld [vmem:[%s11 + $0x1c] sm:$0xf]
  %v1814 = vld [vmem:[%s11 + $0x20] sm:$0xf]
  %v1815 = vld [vmem:[%s11 + $0x24] sm:$0xf]
  %v1816 = vld [vmem:[%s11 + $0x28] sm:$0xf]
  %v1817 = vld [vmem:[%s11 + $0x2c] sm:$0xf]
  %v1818 = vld [vmem:[%s11 + $0x30] sm:$0xf]
  %v1819 = vld [vmem:[%s11 + $0x34] sm:$0xf]
  %v1820 = vld [vmem:[%s11 + $0x38] sm:$0xf]
  %v1821 = vld [vmem:[%s11 + $0x3c] sm:$0xf]
  %v1822 = vld [vmem:[%s11 + $0x40] sm:$0xf]
  %v1823 = vld [vmem:[%s11 + $0x44] sm:$0xf]
  %v1824 = vld [vmem:[%s11 + $0x48] sm:$0xf]
  %v1825 = vld [vmem:[%s11 + $0x4c] sm:$0xf]
  %v1826 = vld [vmem:[%s11 + $0x50] sm:$0xf]
  %v1827 = vld [vmem:[%s11 + $0x54] sm:$0xf]
  %v1828 = vld [vmem:[%s11 + $0x58] sm:$0xf]
  %v1829 = vld [vmem:[%s11 + $0x5c] sm:$0xf]
  %v1830 = vld [vmem:[%s11 + $0x60] sm:$0xf]
  %v1831 = vld [vmem:[%s11 + $0x64] sm:$0xf]
  %v1832 = vld [vmem:[%s11 + $0x68] sm:$0xf]
  %v1833 = vld [vmem:[%s11 + $0x6c] sm:$0xf]
  %v1834 = vld [vmem:[%s11 + $0x70] sm:$0xf]
  %v1835 = vld [vmem:[%s11 + $0x74] sm:$0xf]
  %v1836 = vld [vmem:[%s11 + $0x78] sm:$0xf]
  %v1837 = vld [vmem:[%s11 + $0x7c] sm:$0xf]
  %v1870 = vunpack.c.l.b16 %v1806
  %v1871 = vunpack.c.l.b16 %v1807
  %v1872 = vunpack.c.l.b16 %v1808
  %v1873 = vunpack.c.l.b16 %v1809
  %v1874 = vunpack.c.l.b16 %v1810
  %v1875 = vunpack.c.l.b16 %v1811
  %v1876 = vunpack.c.l.b16 %v1812
  %v1877 = vunpack.c.l.b16 %v1813
  %v1878 = vunpack.c.l.b16 %v1814
  %v1879 = vunpack.c.l.b16 %v1815
  %v1880 = vunpack.c.l.b16 %v1816
  %v1881 = vunpack.c.l.b16 %v1817
  %v1882 = vunpack.c.l.b16 %v1818
  %v1883 = vunpack.c.l.b16 %v1819
  %v1884 = vunpack.c.l.b16 %v1820
  %v1885 = vunpack.c.l.b16 %v1821
  %v1886 = vunpack.c.l.b16 %v1822
  %v1887 = vunpack.c.l.b16 %v1823
  %v1888 = vunpack.c.l.b16 %v1824
  %v1889 = vunpack.c.l.b16 %v1825
  %v1890 = vunpack.c.l.b16 %v1826
  %v1891 = vunpack.c.l.b16 %v1827
  %v1892 = vunpack.c.l.b16 %v1828
  %v1893 = vunpack.c.l.b16 %v1829
  %v1894 = vunpack.c.l.b16 %v1830
  %v1895 = vunpack.c.l.b16 %v1831
  %v1896 = vunpack.c.l.b16 %v1832
  %v1897 = vunpack.c.l.b16 %v1833
  %v1898 = vunpack.c.l.b16 %v1834
  %v1899 = vunpack.c.l.b16 %v1835
  %v1900 = vunpack.c.l.b16 %v1836
  %v1901 = vunpack.c.l.b16 %v1837
  %v1902 = vpack.c.b16 %v1871, %v1870
  %v1903 = vpack.c.b16 %v1873, %v1872
  %v1904 = vpack.c.b16 %v1875, %v1874
  %v1905 = vpack.c.b16 %v1877, %v1876
  %v1906 = vpack.c.b16 %v1879, %v1878
  %v1907 = vpack.c.b16 %v1881, %v1880
  %v1908 = vpack.c.b16 %v1883, %v1882
  %v1909 = vpack.c.b16 %v1885, %v1884
  %v1910 = vpack.c.b16 %v1887, %v1886
  %v1911 = vpack.c.b16 %v1889, %v1888
  %v1912 = vpack.c.b16 %v1891, %v1890
  %v1913 = vpack.c.b16 %v1893, %v1892
  %v1914 = vpack.c.b16 %v1895, %v1894
  %v1915 = vpack.c.b16 %v1897, %v1896
  %v1916 = vpack.c.b16 %v1899, %v1898
  %v1917 = vpack.c.b16 %v1901, %v1900
  %1934 = vmatprep.subr.bf16.mxu0 0
  %1935 = vmatpush1.bf16.msra.mxu0 %v1902
  %1936 = vmatprep.subr.bf16.mxu0 0
  %1937 = vmatpush1.bf16.msra.mxu0 %v1903
  %1938 = vmatprep.subr.bf16.mxu0 0
  %1939 = vmatpush1.bf16.msra.mxu0 %v1904
  %1940 = vmatprep.subr.bf16.mxu0 0
  %1941 = vmatpush1.bf16.msra.mxu0 %v1905
  %1942 = vmatprep.subr.bf16.mxu0 0
  %1943 = vmatpush1.bf16.msra.mxu0 %v1906
  %1944 = vmatprep.subr.bf16.mxu0 0
  %1945 = vmatpush1.bf16.msra.mxu0 %v1907
  %1946 = vmatprep.subr.bf16.mxu0 0
  %1947 = vmatpush1.bf16.msra.mxu0 %v1908
  %1948 = vmatprep.subr.bf16.mxu0 0
  %1949 = vmatpush1.bf16.msra.mxu0 %v1909
  %1950 = vmatprep.subr.bf16.mxu0 0
  %1951 = vmatpush1.bf16.msra.mxu0 %v1910
  %1952 = vmatprep.subr.bf16.mxu0 0
  %1953 = vmatpush1.bf16.msra.mxu0 %v1911
  %1954 = vmatprep.subr.bf16.mxu0 0
  %1955 = vmatpush1.bf16.msra.mxu0 %v1912
  %1956 = vmatprep.subr.bf16.mxu0 0
  %1957 = vmatpush1.bf16.msra.mxu0 %v1913
  %1958 = vmatprep.subr.bf16.mxu0 0
  %1959 = vmatpush1.bf16.msra.mxu0 %v1914
  %1960 = vmatprep.subr.bf16.mxu0 0
  %1961 = vmatpush1.bf16.msra.mxu0 %v1915
  %1962 = vmatprep.subr.bf16.mxu0 0
  %1963 = vmatpush1.bf16.msra.mxu0 %v1916
  %1964 = vmatprep.subr.bf16.mxu0 0
  %1965 = vmatpush1.bf16.msra.mxu0 %v1917
  %1966 = vmatprep.mubr.bf16.mxu0 %v1805
  %1967 = vmatmul.mubr.bf16.gmra.mrb[0].mxu0 %v1804
  %v1968 = vpop.f32.mrb[0].mxu0
  %v1969 = vadd.f32 0.0, %v1968
  %v1970 = vpop.f32.mrb[0].mxu0
  %v1971 = vpop.f32.mrb[0].mxu0
  %v1972 = vpop.f32.mrb[0].mxu0
  %1973 = vdwg.mxu0
  %v1974 = vadd.f32 %v1497, %v1969
  %1975 = vst [vmem:[%s12] sm:$0xff] %v1974
  // Predicated region
  $region50: #{toy_model_forward.3} parent=0 // pred_check
    _
  $region51: #{toy_model_forward.3} parent=0 // pred_check_branch
    %1977 = sbr.rel (0) target = $region53
  $region52: #{toy_model_forward.3} parent=0 // pred_region
    _
  $region53: #{toy_model_forward.3} parent=0 // pred_fallthru
    _
  // Predicated region
  $region54: #{toy_model_forward.3} parent=0 // pred_check
    _
  $region55: #{toy_model_forward.3} parent=0 // pred_check_branch
    %1979 = sbr.rel (0) target = $region57
  $region56: #{toy_model_forward.3} parent=0 // pred_region
    _
  $region57: #{toy_model_forward.3} parent=0 // pred_fallthru
    _
  // Predicated region
  $region58: #{toy_model_forward.3} parent=0 // pred_check
    _
  $region59: #{toy_model_forward.3} parent=0 // pred_check_branch
    %1981 = sbr.rel (0) target = $region61
  $region60: #{toy_model_forward.3} parent=0 // pred_region
    _
  $region61: #{toy_model_forward.3} parent=0 // pred_fallthru
    _
  // Predicated region
  $region62: #{toy_model_forward.3} parent=0 // pred_check
    _
  $region63: #{toy_model_forward.3} parent=0 // pred_check_branch
    %1983 = sbr.rel (0) target = $region65
  $region64: #{toy_model_forward.3} parent=0 // pred_region
    _
  $region65: #{toy_model_forward.3} parent=0 // pred_fallthru
    _

</llo_original>
